<compile_context>
chip_gen: v6e
topology: v6e:2x2x1
jax: 0.10.0
libtpu: 0.0.40
codegen_flags: <defaults>
</compile_context>

<pallas_src>
import jax
import jax.numpy as jnp
import numpy as np
from jax.experimental import pallas as pl
from jax.experimental.pallas import tpu as pltpu

BN_EPS = 1e-5      # torch.nn.BatchNorm1d default eps
NORM_EPS = 1e-12   # torch.nn.functional.normalize default eps
LANE = 128


def _round_up(a, b):
    return (a + b - 1) // b * b


def _make_encoder_kernel(L, N, HP, tm, tk, nI, nK, G_pad):
    """Fused GIN encoder. grid = (layer, row_tile, k_tile); k innermost."""

    def row_mask(row0, nrows):
        # 1.0 on rows that are real nodes, 0.0 on padding rows.
        ridx = row0 + jax.lax.broadcasted_iota(jnp.int32, (nrows, 1), 0)
        return (ridx < N).astype(jnp.float32)

    def kernel(a_ref, x0_ref, pt_ref,
               w1_ref, b1_ref, w2_ref, b2_ref, g_ref, bt_ref,
               wp1_ref, bp1_ref, wp2_ref, bp2_ref,
               y_ref, emb_ref,
               acc, h_prev, h_cur, bn_sum, bn_sq, pooled, emb_parts):
        l = pl.program_id(0)
        i = pl.program_id(1)
        k = pl.program_id(2)

        # ---- one-time init: node features -> resident h buffer ----
        @pl.when((l == 0) & (i == 0) & (k == 0))
        def _():
            h_prev[...] = x0_ref[...]

        # ---- per-layer init: reset BatchNorm statistic accumulators ----
        @pl.when((i == 0) & (k == 0))
        def _():
            bn_sum[...] = jnp.zeros_like(bn_sum)
            bn_sq[...] = jnp.zeros_like(bn_sq)

        # ---- per-row-tile init: reset aggregation accumulator ----
        @pl.when(k == 0)
        def _():
            acc[...] = jnp.zeros_like(acc)

        # ---- streamed neighbour aggregation: acc += A[i, k] @ h_prev[k-rows] ----
        k_off = pl.multiple_of(k * tk, tk)
        h_k = h_prev[pl.ds(k_off, tk), :]
        # A is stored bf16 (exact 0/1 counts); compute in f32 to match the torch reference.
        acc[...] += jnp.dot(a_ref[...].astype(jnp.float32), h_k,
                            preferred_element_type=jnp.float32)

        # ---- row-tile finalize: GIN MLP (+ folded self loop) + relu, pre-BN stash + stats ----
        @pl.when(k == nK - 1)
        def _():
            i_off = pl.multiple_of(i * tm, tm)
            agg = acc[...] + h_prev[pl.ds(i_off, tm), :]      # (A + I) @ h without eye(N)
            h = jnp.dot(agg, w1_ref[0], preferred_element_type=jnp.float32) + b1_ref[0]
            h = jnp.maximum(h, 0.0)
            h = jnp.dot(h, w2_ref[0], preferred_element_type=jnp.float32) + b2_ref[0]
            h = jnp.maximum(h, 0.0)                           # outer F.relu
            h = h * row_mask(i * tm, tm)                      # keep padding rows at zero
            h_cur[pl.ds(i_off, tm), :] = h
            bn_sum[...] += jnp.sum(h, axis=0, keepdims=True)
            bn_sq[...] += jnp.sum(h * h, axis=0, keepdims=True)

        # ---- layer finalize: BatchNorm1d (batch stats) + global_add_pool ----
        @pl.when((i == nI - 1) & (k == nK - 1))
        def _():
            inv_n = 1.0 / N
            mean = bn_sum[...] * inv_n
            var = jnp.maximum(bn_sq[...] * inv_n - mean * mean, 0.0)   # biased variance
            inv = jax.lax.rsqrt(var + BN_EPS)
            scale = g_ref[0] * inv
            shift = bt_ref[0] - mean * scale
            pooled[...] = jnp.zeros_like(pooled)

            @pl.loop(0, nI)
            def _(r):
                r_off = pl.multiple_of(r * tm, tm)
                hb = h_cur[pl.ds(r_off, tm), :] * scale + shift
                hb = hb * row_mask(r * tm, tm)
                h_prev[pl.ds(r_off, tm), :] = hb              # becomes next layer's input
                p_chunk = pt_ref[pl.ds(r_off, tm), :].astype(jnp.float32)   # [tm, G_pad]
                # pooled += P_chunk^T @ hb  (contract over the node axis)
                pooled[...] += jax.lax.dot_general(
                    p_chunk, hb, (((0,), (0,)), ((), ())),
                    preferred_element_type=jnp.float32)

            emb_parts[l] = pooled[...]

        # ---- global finalize: projection head + L2 normalization ----
        @pl.when((l == L - 1) & (i == nI - 1) & (k == nK - 1))
        def _():
            # 128-aligned lane concat of per-layer pooled slabs -> lane-dense [G_pad, L*HP]
            emb = jnp.concatenate([emb_parts[j] for j in range(L)], axis=1)
            y = jnp.dot(emb, wp1_ref[...], preferred_element_type=jnp.float32) + bp1_ref[...]
            y = jnp.maximum(y, 0.0)
            y = jnp.dot(y, wp2_ref[...], preferred_element_type=jnp.float32) + bp2_ref[...]

            def l2norm(v):
                ss = jnp.sum(v * v, axis=1, keepdims=True)
                # x * rsqrt(max(ss, eps^2)) == x / max(||x||, eps)  (F.normalize semantics)
                return v * jax.lax.rsqrt(jnp.maximum(ss, NORM_EPS * NORM_EPS))

            y_ref[...] = l2norm(y)
            emb_ref[...] = l2norm(emb)

    return kernel


def init_params(key, num_features: int, dim: int, num_gc_layers: int):
    """Deterministic synthetic parameters (shapes follow Encoder_Core.__init__)."""
    params = []
    for i in range(num_gc_layers):
        in_dim = num_features if i == 0 else dim
        key, k1, k2 = jax.random.split(key, 3)
        params += [
            0.1 * jax.random.normal(k1, (in_dim, dim), jnp.float32),   # GIN MLP Linear 1 (in, out)
            jnp.zeros((1, dim), jnp.float32),                          # bias 1
            0.1 * jax.random.normal(k2, (dim, dim), jnp.float32),      # GIN MLP Linear 2
            jnp.zeros((1, dim), jnp.float32),                          # bias 2
            jnp.ones((1, dim), jnp.float32),                           # BN gamma
            jnp.zeros((1, dim), jnp.float32),                          # BN beta
        ]
    hd = num_gc_layers * dim
    key, k1, k2 = jax.random.split(key, 3)
    params += [
        0.1 * jax.random.normal(k1, (hd, hd), jnp.float32),            # proj_head Linear 1
        jnp.zeros((1, hd), jnp.float32),
        0.1 * jax.random.normal(k2, (hd, hd), jnp.float32),            # proj_head Linear 2
        jnp.zeros((1, hd), jnp.float32),
    ]
    return params


def encoder_core_forward(x, edge_index, batch_ids, params,
                         num_gc_layers: int, dim: int, num_graphs: int):
    x = jnp.asarray(x, jnp.float32)
    N, F = x.shape
    L = num_gc_layers
    HP = _round_up(max(F, dim), LANE)          # lane-padded per-layer feature width
    LP = L * HP                                # lane-padded embedding width
    G_pad = _round_up(num_graphs, 8)

    # Adjacency tiling: stream A from HBM in bf16 tiles; h stays resident in VMEM.
    if N <= 256:
        N_pad = _round_up(N, 8)
        tm = tk = N_pad                        # single tile
    else:
        tm, tk = 256, 512                      # fits v7x's 64 MiB VMEM; fine on v5e/v6e too
        N_pad = _round_up(N, 512)
    nI, nK = N_pad // tm, N_pad // tk

    src, dst = edge_index[0], edge_index[1]
    # message-passing matrix (no +I: the self loop is folded inside the kernel)
    A = jnp.zeros((N_pad, N_pad), jnp.float32).at[dst, src].add(1.0).astype(jnp.bfloat16)
    # pooling matrix, node-major so pooling uses sublane-sliced contraction
    PT = jnp.zeros((N_pad, G_pad), jnp.bfloat16).at[:N, :num_graphs].set(
        (batch_ids[:, None] == jnp.arange(num_graphs)[None, :]).astype(jnp.bfloat16))
    x0 = jnp.zeros((N_pad, HP), jnp.float32).at[:N, :F].set(x)

    # Stack + zero-pad per-layer parameters to lane-dense [*, HP] shapes.
    W1 = jnp.zeros((L, HP, HP), jnp.float32)
    B1 = jnp.zeros((L, 1, HP), jnp.float32)
    W2 = jnp.zeros((L, HP, HP), jnp.float32)
    B2 = jnp.zeros((L, 1, HP), jnp.float32)
    GA = jnp.zeros((L, 1, HP), jnp.float32)
    BE = jnp.zeros((L, 1, HP), jnp.float32)
    for i in range(L):
        w1, b1, w2, b2, gamma, beta = params[6 * i: 6 * (i + 1)]
        W1 = W1.at[i, :w1.shape[0], :dim].set(w1)
        B1 = B1.at[i, 0, :dim].set(b1.reshape(-1))
        W2 = W2.at[i, :dim, :dim].set(w2)
        B2 = B2.at[i, 0, :dim].set(b2.reshape(-1))
        GA = GA.at[i, 0, :dim].set(gamma.reshape(-1))
        BE = BE.at[i, 0, :dim].set(beta.reshape(-1))

    # Projection-head weights scattered into the lane-padded embedding layout.
    col_idx = (jnp.arange(L)[:, None] * HP + jnp.arange(dim)[None, :]).reshape(-1)
    wp1, bp1, wp2, bp2 = params[6 * L:]
    WP1 = jnp.zeros((LP, LP), jnp.float32).at[col_idx[:, None], col_idx[None, :]].set(wp1)
    BP1 = jnp.zeros((1, LP), jnp.float32).at[0, col_idx].set(bp1.reshape(-1))
    WP2 = jnp.zeros((LP, LP), jnp.float32).at[col_idx[:, None], col_idx[None, :]].set(wp2)
    BP2 = jnp.zeros((1, LP), jnp.float32).at[0, col_idx].set(bp2.reshape(-1))

    res2 = lambda l, i, k: (0, 0)              # full-resident 2-D operands
    per_layer3 = lambda l, i, k: (l, 0, 0)     # per-layer stacked operands

    in_specs = [
        pl.BlockSpec((tm, tk), lambda l, i, k: (i, k)),     # A (bf16, streamed tiles)
        pl.BlockSpec((N_pad, HP), res2),                    # x0
        pl.BlockSpec((N_pad, G_pad), res2),                 # P^T (bf16)
        pl.BlockSpec((1, HP, HP), per_layer3),              # W1
        pl.BlockSpec((1, 1, HP), per_layer3),               # b1
        pl.BlockSpec((1, HP, HP), per_layer3),              # W2
        pl.BlockSpec((1, 1, HP), per_layer3),               # b2
        pl.BlockSpec((1, 1, HP), per_layer3),               # gamma
        pl.BlockSpec((1, 1, HP), per_layer3),               # beta
        pl.BlockSpec((LP, LP), res2),                       # proj W1
        pl.BlockSpec((1, LP), res2),                        # proj b1
        pl.BlockSpec((LP, LP), res2),                       # proj W2
        pl.BlockSpec((1, LP), res2),                        # proj b2
    ]
    out_specs = (pl.BlockSpec((G_pad, LP), res2),
                 pl.BlockSpec((G_pad, LP), res2))
    scratch_shapes = [
        pltpu.VMEM((tm, HP), jnp.float32),        # aggregation accumulator
        pltpu.VMEM((N_pad, HP), jnp.float32),     # h_prev (layer input, resident)
        pltpu.VMEM((N_pad, HP), jnp.float32),     # h_cur  (pre-BN layer output)
        pltpu.VMEM((1, HP), jnp.float32),         # BN sum
        pltpu.VMEM((1, HP), jnp.float32),         # BN sum of squares
        pltpu.VMEM((G_pad, HP), jnp.float32),     # pooled accumulator
        pltpu.VMEM((L, G_pad, HP), jnp.float32),  # per-layer pooled embeddings
    ]

    vmem_est = (2 * tm * tk * 2                 # double-buffered A tiles (bf16)
                + 3 * N_pad * HP * 4            # x0 + h_prev + h_cur
                + N_pad * G_pad * 2             # P^T
                + 4 * HP * HP * 4               # double-buffered W1/W2 blocks
                + 2 * LP * LP * 4               # projection weights
                + 2 * G_pad * LP * 4            # outputs
                + tm * HP * 4                   # acc
                + (L + 1) * G_pad * HP * 4      # pooled + emb_parts
                + 64 * 1024)
    vmem_limit = int(min(max(2 * vmem_est, 16 * 2**20), 64 * 2**20))   # 64 MiB v7x-safe cap

    kernel = _make_encoder_kernel(L, N, HP, tm, tk, nI, nK, G_pad)
    y_pad, emb_pad = pl.pallas_call(
        kernel,
        out_shape=(jax.ShapeDtypeStruct((G_pad, LP), jnp.float32),
                   jax.ShapeDtypeStruct((G_pad, LP), jnp.float32)),
        grid_spec=pltpu.PrefetchScalarGridSpec(
            num_scalar_prefetch=0,
            grid=(L, nI, nK),
            in_specs=in_specs,
            out_specs=out_specs,
            scratch_shapes=scratch_shapes),
        compiler_params=pltpu.CompilerParams(
            # Layer & k axes are true reductions; the row axis is coupled through the
            # resident h buffers and the BatchNorm batch statistics.
            # TODO(synk): split BN into partial-sum passes so the row axis can be
            # marked "parallel" for v7x's two TensorCores.
            dimension_semantics=("arbitrary", "arbitrary", "arbitrary"),
            vmem_limit_bytes=vmem_limit),
    )(A, x0, PT, W1, B1, W2, B2, GA, BE, WP1, BP1, WP2, BP2)

    # Padded columns/rows are exactly zero, so slicing after normalization is exact.
    y = jnp.take(y_pad[:num_graphs], col_idx, axis=1)
    emb = jnp.take(emb_pad[:num_graphs], col_idx, axis=1)
    return y, emb


def _reference_forward(x, edge_index, batch_ids, params, num_gc_layers, dim, num_graphs):
    """Pure-JAX reference (mirrors the PyTorch math)."""
    x = jnp.asarray(x, jnp.float32)
    N = x.shape[0]
    src, dst = edge_index[0], edge_index[1]
    A = jnp.zeros((N, N), jnp.float32).at[dst, src].add(1.0)
    A_hat = A + jnp.eye(N, dtype=jnp.float32)
    P = (batch_ids[None, :] == jnp.arange(num_graphs)[:, None]).astype(jnp.float32)
    h = x
    pooled = []
    for i in range(num_gc_layers):
        w1, b1, w2, b2, gamma, beta = params[6 * i: 6 * (i + 1)]
        z = A_hat @ h
        z = jnp.maximum(z @ w1 + b1, 0.0)
        z = z @ w2 + b2
        z = jnp.maximum(z, 0.0)
        mean = jnp.mean(z, axis=0, keepdims=True)
        var = jnp.mean((z - mean) ** 2, axis=0, keepdims=True)
        h = (z - mean) / jnp.sqrt(var + BN_EPS) * gamma + beta
        pooled.append(P @ h)
    emb = jnp.concatenate(pooled, axis=1)
    wp1, bp1, wp2, bp2 = params[6 * num_gc_layers:]
    y = jnp.maximum(emb @ wp1 + bp1, 0.0) @ wp2 + bp2

    def norm(v):
        return v / jnp.maximum(jnp.sqrt(jnp.sum(v * v, axis=1, keepdims=True)), NORM_EPS)

    return norm(y), norm(emb)


if __name__ == "__main__":
    NUM_FEATURES = 4
    DIM = 32
    NUM_GC_LAYERS = 3

    key = jax.random.PRNGKey(0)
    params = init_params(jax.random.PRNGKey(42), NUM_FEATURES, DIM, NUM_GC_LAYERS)

    # ---------- test 1: tiny batch (2 graphs x 4 nodes), single-tile path ----------
    key, kx = jax.random.split(key)
    x_small = jax.random.normal(kx, (8, NUM_FEATURES), jnp.float32)

    def ring(offset, n):
        s = list(range(n)) + [(v + 1) % n for v in range(n)]
        t = [(v + 1) % n for v in range(n)] + list(range(n))
        return [v + offset for v in s], [v + offset for v in t]

    s0, t0 = ring(0, 4)
    s1, t1 = ring(4, 4)
    edge_small = jnp.array([s0 + s1, t0 + t1], dtype=jnp.int32)
    batch_small = jnp.array([0, 0, 0, 0, 1, 1, 1, 1], dtype=jnp.int32)

    y, emb = encoder_core_forward(x_small, edge_small, batch_small, params,
                                  NUM_GC_LAYERS, DIM, 2)
    jax.block_until_ready((y, emb))
    y_ref, emb_ref = _reference_forward(x_small, edge_small, batch_small, params,
                                        NUM_GC_LAYERS, DIM, 2)
    np.testing.assert_allclose(np.asarray(y), np.asarray(y_ref), rtol=1e-3, atol=1e-4)
    np.testing.assert_allclose(np.asarray(emb), np.asarray(emb_ref), rtol=1e-3, atol=1e-4)

    # ---------- test 2: larger batch exercising the tiled / multi-grid-step path ----------
    N2, G2 = 600, 3                              # -> N_pad=1024, grid=(3, 4, 2)
    key, kx2 = jax.random.split(key)
    x_big = jax.random.normal(kx2, (N2, NUM_FEATURES), jnp.float32)
    npg = N2 // G2
    srcs, dsts = [], []
    for g in range(G2):
        off = g * npg
        for v in range(npg):
            for d in (1, 7):                     # ring + skip connections, both directions
                u = (v + d) % npg
                srcs += [off + v, off + u]
                dsts += [off + u, off + v]
    edge_big = jnp.array([srcs, dsts], dtype=jnp.int32)
    batch_big = jnp.asarray(np.repeat(np.arange(G2), npg), dtype=jnp.int32)

    y2, emb2 = encoder_core_forward(x_big, edge_big, batch_big, params,
                                    NUM_GC_LAYERS, DIM, G2)
    jax.block_until_ready((y2, emb2))
    y2_ref, emb2_ref = _reference_forward(x_big, edge_big, batch_big, params,
                                          NUM_GC_LAYERS, DIM, G2)
    np.testing.assert_allclose(np.asarray(y2), np.asarray(y2_ref), rtol=1e-3, atol=1e-4)
    np.testing.assert_allclose(np.asarray(emb2), np.asarray(emb2_ref), rtol=1e-3, atol=1e-4)

    print("KERNEL_OK")
</pallas_src>

<mosaic_0001>
module attributes {stable_mosaic.version = 11 : i64} {
  func.func @kernel(%arg0: i32, %arg1: i32, %arg2: i32, %arg3: memref<8x8xbf16, #tpu.memory_space<vmem>>, %arg4: memref<8x128xf32, #tpu.memory_space<vmem>>, %arg5: memref<8x8xbf16, #tpu.memory_space<vmem>>, %arg6: memref<1x128x128xf32, #tpu.memory_space<vmem>>, %arg7: memref<1x1x128xf32, #tpu.memory_space<vmem>>, %arg8: memref<1x128x128xf32, #tpu.memory_space<vmem>>, %arg9: memref<1x1x128xf32, #tpu.memory_space<vmem>>, %arg10: memref<1x1x128xf32, #tpu.memory_space<vmem>>, %arg11: memref<1x1x128xf32, #tpu.memory_space<vmem>>, %arg12: memref<384x384xf32, #tpu.memory_space<vmem>>, %arg13: memref<1x384xf32, #tpu.memory_space<vmem>>, %arg14: memref<384x384xf32, #tpu.memory_space<vmem>>, %arg15: memref<1x384xf32, #tpu.memory_space<vmem>>, %arg16: memref<8x384xf32, #tpu.memory_space<vmem>>, %arg17: memref<8x384xf32, #tpu.memory_space<vmem>>, %arg18: memref<8x128xf32, #tpu.memory_space<vmem>>, %arg19: memref<8x128xf32, #tpu.memory_space<vmem>>, %arg20: memref<8x128xf32, #tpu.memory_space<vmem>>, %arg21: memref<1x128xf32, #tpu.memory_space<vmem>>, %arg22: memref<1x128xf32, #tpu.memory_space<vmem>>, %arg23: memref<8x128xf32, #tpu.memory_space<vmem>>, %arg24: memref<3x8x128xf32, #tpu.memory_space<vmem>>) attributes {dimension_semantics = [#tpu.dimension_semantics<arbitrary>, #tpu.dimension_semantics<arbitrary>, #tpu.dimension_semantics<arbitrary>], iteration_bounds = array<i64: 3, 1, 1>, scalar_prefetch = 0 : i64, scratch_operands = 7 : i64, tpu.core_type = #tpu.core_type<tc>, window_params = [{transform_indices = @transform_0, window_bounds = array<i64: 8, 8>}, {pipeline_mode = #tpu.pipeline_mode<synchronous>, transform_indices = @transform_1, window_bounds = array<i64: 8, 128>}, {pipeline_mode = #tpu.pipeline_mode<synchronous>, transform_indices = @transform_2, window_bounds = array<i64: 8, 8>}, {transform_indices = @transform_3, window_bounds = array<i64: 1, 128, 128>}, {transform_indices = @transform_4, window_bounds = array<i64: 1, 1, 128>}, {transform_indices = @transform_5, window_bounds = array<i64: 1, 128, 128>}, {transform_indices = @transform_6, window_bounds = array<i64: 1, 1, 128>}, {transform_indices = @transform_7, window_bounds = array<i64: 1, 1, 128>}, {transform_indices = @transform_8, window_bounds = array<i64: 1, 1, 128>}, {pipeline_mode = #tpu.pipeline_mode<synchronous>, transform_indices = @transform_9, window_bounds = array<i64: 384, 384>}, {pipeline_mode = #tpu.pipeline_mode<synchronous>, transform_indices = @transform_10, window_bounds = array<i64: 1, 384>}, {pipeline_mode = #tpu.pipeline_mode<synchronous>, transform_indices = @transform_11, window_bounds = array<i64: 384, 384>}, {pipeline_mode = #tpu.pipeline_mode<synchronous>, transform_indices = @transform_12, window_bounds = array<i64: 1, 384>}, {pipeline_mode = #tpu.pipeline_mode<synchronous>, transform_indices = @transform_13, window_bounds = array<i64: 8, 384>}, {pipeline_mode = #tpu.pipeline_mode<synchronous>, transform_indices = @transform_14, window_bounds = array<i64: 8, 384>}]} {
    %c0_i32 = arith.constant 0 : i32
    %0 = arith.cmpi eq, %arg0, %c0_i32 : i32
    %c0_i32_0 = arith.constant 0 : i32
    %1 = arith.cmpi eq, %arg1, %c0_i32_0 : i32
    %2 = arith.andi %0, %1 : i1
    %c0_i32_1 = arith.constant 0 : i32
    %3 = arith.cmpi eq, %arg2, %c0_i32_1 : i32
    %4 = arith.andi %2, %3 : i1
    %5 = arith.extui %4 : i1 to i32
    %c0_i32_2 = arith.constant 0 : i32
    %6 = arith.cmpi ne, %5, %c0_i32_2 : i32
    scf.if %6 {
      %c0_22 = arith.constant 0 : index
      %c0_23 = arith.constant 0 : index
      %40 = vector.load %arg4[%c0_22, %c0_23] : memref<8x128xf32, #tpu.memory_space<vmem>>, vector<8x128xf32>
      %c0_24 = arith.constant 0 : index
      %c0_25 = arith.constant 0 : index
      %41 = vector.load %arg19[%c0_24, %c0_25] : memref<8x128xf32, #tpu.memory_space<vmem>>, vector<8x128xf32>
      tpu.vector_store %arg19[%c0_24, %c0_25], %40 {strides = array<i32>} : memref<8x128xf32, #tpu.memory_space<vmem>>, vector<8x128xf32>,
    } else {
    }
    %c0_i32_3 = arith.constant 0 : i32
    %7 = arith.cmpi eq, %arg1, %c0_i32_3 : i32
    %c0_i32_4 = arith.constant 0 : i32
    %8 = arith.cmpi eq, %arg2, %c0_i32_4 : i32
    %9 = arith.andi %7, %8 : i1
    %10 = arith.extui %9 : i1 to i32
    %c0_i32_5 = arith.constant 0 : i32
    %11 = arith.cmpi ne, %10, %c0_i32_5 : i32
    scf.if %11 {
      %cst_22 = arith.constant 0.000000e+00 : f32
      %40 = vector.broadcast %cst_22 : f32 to vector<1x128xf32>
      %c0_23 = arith.constant 0 : index
      %c0_24 = arith.constant 0 : index
      %41 = vector.load %arg21[%c0_23, %c0_24] : memref<1x128xf32, #tpu.memory_space<vmem>>, vector<1x128xf32>
      tpu.vector_store %arg21[%c0_23, %c0_24], %40 {strides = array<i32>} : memref<1x128xf32, #tpu.memory_space<vmem>>, vector<1x128xf32>,
      %cst_25 = arith.constant 0.000000e+00 : f32
      %42 = vector.broadcast %cst_25 : f32 to vector<1x128xf32>
      %c0_26 = arith.constant 0 : index
      %c0_27 = arith.constant 0 : index
      %43 = vector.load %arg22[%c0_26, %c0_27] : memref<1x128xf32, #tpu.memory_space<vmem>>, vector<1x128xf32>
      tpu.vector_store %arg22[%c0_26, %c0_27], %42 {strides = array<i32>} : memref<1x128xf32, #tpu.memory_space<vmem>>, vector<1x128xf32>,
    } else {
    }
    %c0_i32_6 = arith.constant 0 : i32
    %12 = arith.cmpi eq, %arg2, %c0_i32_6 : i32
    %13 = arith.extui %12 : i1 to i32
    %c0_i32_7 = arith.constant 0 : i32
    %14 = arith.cmpi ne, %13, %c0_i32_7 : i32
    scf.if %14 {
      %cst_22 = arith.constant 0.000000e+00 : f32
      %40 = vector.broadcast %cst_22 : f32 to vector<8x128xf32>
      %c0_23 = arith.constant 0 : index
      %c0_24 = arith.constant 0 : index
      %41 = vector.load %arg18[%c0_23, %c0_24] : memref<8x128xf32, #tpu.memory_space<vmem>>, vector<8x128xf32>
      tpu.vector_store %arg18[%c0_23, %c0_24], %40 {strides = array<i32>} : memref<8x128xf32, #tpu.memory_space<vmem>>, vector<8x128xf32>,
    } else {
    }
    %c8_i32 = arith.constant 8 : i32
    %15 = arith.muli %arg2, %c8_i32 : i32
    %16 = tpu.assume_multiple %15, 8 : i32
    %17 = arith.index_cast %16 : i32 to index
    %c0 = arith.constant 0 : index
    %18 = vector.load %arg19[%17, %c0] : memref<8x128xf32, #tpu.memory_space<vmem>>, vector<8x128xf32>
    %c0_8 = arith.constant 0 : index
    %c0_9 = arith.constant 0 : index
    %19 = vector.load %arg18[%c0_8, %c0_9] : memref<8x128xf32, #tpu.memory_space<vmem>>, vector<8x128xf32>
    %c0_10 = arith.constant 0 : index
    %c0_11 = arith.constant 0 : index
    %20 = vector.load %arg3[%c0_10, %c0_11] : memref<8x8xbf16, #tpu.memory_space<vmem>>, vector<8x8xbf16>
    %21 = arith.extf %20 : vector<8x8xbf16> to vector<8x8xf32>
    %cst = arith.constant dense<0.000000e+00> : vector<8x128xf32>
    %22 = tpu.matmul %21, %18, %cst {dimension_numbers = #tpu.dot_dimension_numbers<[1], [0], [0], [1], [0, 0, 1, 1], [], []>} : vector<8x8xf32>, vector<8x128xf32>, vector<8x128xf32> -> vector<8x128xf32>
    %23 = arith.addf %19, %22 : vector<8x128xf32>
    %c0_12 = arith.constant 0 : index
    %c0_13 = arith.constant 0 : index
    %24 = vector.load %arg18[%c0_12, %c0_13] : memref<8x128xf32, #tpu.memory_space<vmem>>, vector<8x128xf32>
    tpu.vector_store %arg18[%c0_12, %c0_13], %23 {strides = array<i32>} : memref<8x128xf32, #tpu.memory_space<vmem>>, vector<8x128xf32>,
    %c0_i32_14 = arith.constant 0 : i32
    %25 = arith.cmpi eq, %arg2, %c0_i32_14 : i32
    %26 = arith.extui %25 : i1 to i32
    %c0_i32_15 = arith.constant 0 : i32
    %27 = arith.cmpi ne, %26, %c0_i32_15 : i32
    scf.if %27 {
      %c8_i32_22 = arith.constant 8 : i32
      %40 = arith.muli %arg1, %c8_i32_22 : i32
      %41 = tpu.assume_multiple %40, 8 : i32
      %c0_23 = arith.constant 0 : index
      %c0_24 = arith.constant 0 : index
      %42 = vector.load %arg18[%c0_23, %c0_24] : memref<8x128xf32, #tpu.memory_space<vmem>>, vector<8x128xf32>
      %43 = arith.index_cast %41 : i32 to index
      %c0_25 = arith.constant 0 : index
      %44 = vector.load %arg19[%43, %c0_25] : memref<8x128xf32, #tpu.memory_space<vmem>>, vector<8x128xf32>
      %45 = arith.addf %42, %44 : vector<8x128xf32>
      %c0_26 = arith.constant 0 : index
      %c0_27 = arith.constant 0 : index
      %c0_28 = arith.constant 0 : index
      %46 = vector.load %arg6[%c0_26, %c0_27, %c0_28] : memref<1x128x128xf32, #tpu.memory_space<vmem>>, vector<1x128x128xf32>
      %47 = vector.shape_cast %46 : vector<1x128x128xf32> to vector<128x128xf32>
      %cst_29 = arith.constant dense<0.000000e+00> : vector<8x128xf32>
      %48 = tpu.matmul %45, %47, %cst_29 {dimension_numbers = #tpu.dot_dimension_numbers<[1], [0], [0], [1], [0, 0, 1, 1], [], []>} : vector<8x128xf32>, vector<128x128xf32>, vector<8x128xf32> -> vector<8x128xf32>
      %c0_30 = arith.constant 0 : index
      %c0_31 = arith.constant 0 : index
      %c0_32 = arith.constant 0 : index
      %49 = vector.load %arg7[%c0_30, %c0_31, %c0_32] : memref<1x1x128xf32, #tpu.memory_space<vmem>>, vector<1x1x128xf32>
      %50 = vector.shape_cast %49 : vector<1x1x128xf32> to vector<1x128xf32>
      %51 = vector.broadcast %50 : vector<1x128xf32> to vector<8x128xf32>
      %52 = arith.addf %48, %51 : vector<8x128xf32>
      %cst_33 = arith.constant 0.000000e+00 : f32
      %53 = vector.broadcast %cst_33 : f32 to vector<8x128xf32>
      %54 = arith.maximumf %52, %53 : vector<8x128xf32>
      %c0_34 = arith.constant 0 : index
      %c0_35 = arith.constant 0 : index
      %c0_36 = arith.constant 0 : index
      %55 = vector.load %arg8[%c0_34, %c0_35, %c0_36] : memref<1x128x128xf32, #tpu.memory_space<vmem>>, vector<1x128x128xf32>
      %56 = vector.shape_cast %55 : vector<1x128x128xf32> to vector<128x128xf32>
      %cst_37 = arith.constant dense<0.000000e+00> : vector<8x128xf32>
      %57 = tpu.matmul %54, %56, %cst_37 {dimension_numbers = #tpu.dot_dimension_numbers<[1], [0], [0], [1], [0, 0, 1, 1], [], []>} : vector<8x128xf32>, vector<128x128xf32>, vector<8x128xf32> -> vector<8x128xf32>
      %c0_38 = arith.constant 0 : index
      %c0_39 = arith.constant 0 : index
      %c0_40 = arith.constant 0 : index
      %58 = vector.load %arg9[%c0_38, %c0_39, %c0_40] : memref<1x1x128xf32, #tpu.memory_space<vmem>>, vector<1x1x128xf32>
      %59 = vector.shape_cast %58 : vector<1x1x128xf32> to vector<1x128xf32>
      %60 = vector.broadcast %59 : vector<1x128xf32> to vector<8x128xf32>
      %61 = arith.addf %57, %60 : vector<8x128xf32>
      %cst_41 = arith.constant 0.000000e+00 : f32
      %62 = vector.broadcast %cst_41 : f32 to vector<8x128xf32>
      %63 = arith.maximumf %61, %62 : vector<8x128xf32>
      %c8_i32_42 = arith.constant 8 : i32
      %64 = arith.muli %arg1, %c8_i32_42 : i32
      %65 = tpu.iota {dimensions = array<i32: 0>} : vector<8x1xi32>
      %66 = vector.broadcast %64 : i32 to vector<8x1xi32>
      %67 = arith.addi %66, %65 : vector<8x1xi32>
      %c8_i32_43 = arith.constant 8 : i32
      %68 = vector.broadcast %c8_i32_43 : i32 to vector<8x1xi32>
      %69 = arith.cmpi slt, %67, %68 : vector<8x1xi32>
      %70 = arith.extui %69 : vector<8x1xi1> to vector<8x1xi32>
      %71 = arith.sitofp %70 : vector<8x1xi32> to vector<8x1xf32>
      %72 = vector.broadcast %71 : vector<8x1xf32> to vector<8x128xf32>
      %73 = arith.mulf %63, %72 : vector<8x128xf32>
      %74 = arith.index_cast %41 : i32 to index
      %c0_44 = arith.constant 0 : index
      %75 = vector.load %arg20[%74, %c0_44] : memref<8x128xf32, #tpu.memory_space<vmem>>, vector<8x128xf32>
      tpu.vector_store %arg20[%74, %c0_44], %73 {strides = array<i32>} : memref<8x128xf32, #tpu.memory_space<vmem>>, vector<8x128xf32>,
      %c0_45 = arith.constant 0 : index
      %c0_46 = arith.constant 0 : index
      %76 = vector.load %arg21[%c0_45, %c0_46] : memref<1x128xf32, #tpu.memory_space<vmem>>, vector<1x128xf32>
      %cst_47 = arith.constant dense<0.000000e+00> : vector<128xf32>
      %77 = vector.multi_reduction <add>, %73, %cst_47 [0] : vector<8x128xf32> to vector<128xf32>
      %78 = vector.shape_cast %77 : vector<128xf32> to vector<1x128xf32>
      %79 = arith.addf %76, %78 : vector<1x128xf32>
      %c0_48 = arith.constant 0 : index
      %c0_49 = arith.constant 0 : index
      %80 = vector.load %arg21[%c0_48, %c0_49] : memref<1x128xf32, #tpu.memory_space<vmem>>, vector<1x128xf32>
      tpu.vector_store %arg21[%c0_48, %c0_49], %79 {strides = array<i32>} : memref<1x128xf32, #tpu.memory_space<vmem>>, vector<1x128xf32>,
      %c0_50 = arith.constant 0 : index
      %c0_51 = arith.constant 0 : index
      %81 = vector.load %arg22[%c0_50, %c0_51] : memref<1x128xf32, #tpu.memory_space<vmem>>, vector<1x128xf32>
      %82 = arith.mulf %73, %73 : vector<8x128xf32>
      %cst_52 = arith.constant dense<0.000000e+00> : vector<128xf32>
      %83 = vector.multi_reduction <add>, %82, %cst_52 [0] : vector<8x128xf32> to vector<128xf32>
      %84 = vector.shape_cast %83 : vector<128xf32> to vector<1x128xf32>
      %85 = arith.addf %81, %84 : vector<1x128xf32>
      %c0_53 = arith.constant 0 : index
      %c0_54 = arith.constant 0 : index
      %86 = vector.load %arg22[%c0_53, %c0_54] : memref<1x128xf32, #tpu.memory_space<vmem>>, vector<1x128xf32>
      tpu.vector_store %arg22[%c0_53, %c0_54], %85 {strides = array<i32>} : memref<1x128xf32, #tpu.memory_space<vmem>>, vector<1x128xf32>,
    } else {
    }
    %c0_i32_16 = arith.constant 0 : i32
    %28 = arith.cmpi eq, %arg1, %c0_i32_16 : i32
    %c0_i32_17 = arith.constant 0 : i32
    %29 = arith.cmpi eq, %arg2, %c0_i32_17 : i32
    %30 = arith.andi %28, %29 : i1
    %31 = arith.extui %30 : i1 to i32
    %c0_i32_18 = arith.constant 0 : i32
    %32 = arith.cmpi ne, %31, %c0_i32_18 : i32
    scf.if %32 {
      %c0_22 = arith.constant 0 : index
      %c0_23 = arith.constant 0 : index
      %40 = vector.load %arg21[%c0_22, %c0_23] : memref<1x128xf32, #tpu.memory_space<vmem>>, vector<1x128xf32>
      %cst_24 = arith.constant 1.250000e-01 : f32
      %41 = vector.broadcast %cst_24 : f32 to vector<1x128xf32>
      %42 = arith.mulf %40, %41 : vector<1x128xf32>
      %c0_25 = arith.constant 0 : index
      %c0_26 = arith.constant 0 : index
      %43 = vector.load %arg22[%c0_25, %c0_26] : memref<1x128xf32, #tpu.memory_space<vmem>>, vector<1x128xf32>
      %cst_27 = arith.constant 1.250000e-01 : f32
      %44 = vector.broadcast %cst_27 : f32 to vector<1x128xf32>
      %45 = arith.mulf %43, %44 : vector<1x128xf32>
      %46 = arith.mulf %42, %42 : vector<1x128xf32>
      %47 = arith.subf %45, %46 : vector<1x128xf32>
      %cst_28 = arith.constant 0.000000e+00 : f32
      %48 = vector.broadcast %cst_28 : f32 to vector<1x128xf32>
      %49 = arith.maximumf %47, %48 : vector<1x128xf32>
      %cst_29 = arith.constant 9.99999974E-6 : f32
      %50 = vector.broadcast %cst_29 : f32 to vector<1x128xf32>
      %51 = arith.addf %49, %50 : vector<1x128xf32>
      %52 = math.rsqrt %51 : vector<1x128xf32>
      %c0_30 = arith.constant 0 : index
      %c0_31 = arith.constant 0 : index
      %c0_32 = arith.constant 0 : index
      %53 = vector.load %arg10[%c0_30, %c0_31, %c0_32] : memref<1x1x128xf32, #tpu.memory_space<vmem>>, vector<1x1x128xf32>
      %54 = vector.shape_cast %53 : vector<1x1x128xf32> to vector<1x128xf32>
      %55 = arith.mulf %54, %52 : vector<1x128xf32>
      %c0_33 = arith.constant 0 : index
      %c0_34 = arith.constant 0 : index
      %c0_35 = arith.constant 0 : index
      %56 = vector.load %arg11[%c0_33, %c0_34, %c0_35] : memref<1x1x128xf32, #tpu.memory_space<vmem>>, vector<1x1x128xf32>
      %57 = vector.shape_cast %56 : vector<1x1x128xf32> to vector<1x128xf32>
      %58 = arith.mulf %42, %55 : vector<1x128xf32>
      %59 = arith.subf %57, %58 : vector<1x128xf32>
      %cst_36 = arith.constant 0.000000e+00 : f32
      %60 = vector.broadcast %cst_36 : f32 to vector<8x128xf32>
      %c0_37 = arith.constant 0 : index
      %c0_38 = arith.constant 0 : index
      %61 = vector.load %arg23[%c0_37, %c0_38] : memref<8x128xf32, #tpu.memory_space<vmem>>, vector<8x128xf32>
      tpu.vector_store %arg23[%c0_37, %c0_38], %60 {strides = array<i32>} : memref<8x128xf32, #tpu.memory_space<vmem>>, vector<8x128xf32>,
      %c0_i32_39 = arith.constant 0 : i32
      %c1_i32 = arith.constant 1 : i32
      %62 = arith.muli %c0_i32_39, %c1_i32 : i32
      %c0_i32_40 = arith.constant 0 : i32
      %63 = arith.addi %c0_i32_40, %62 : i32
      %c8_i32_41 = arith.constant 8 : i32
      %64 = arith.muli %63, %c8_i32_41 : i32
      %65 = tpu.assume_multiple %64, 8 : i32
      %66 = arith.index_cast %65 : i32 to index
      %c0_42 = arith.constant 0 : index
      %67 = vector.load %arg20[%66, %c0_42] : memref<8x128xf32, #tpu.memory_space<vmem>>, vector<8x128xf32>
      %68 = vector.broadcast %55 : vector<1x128xf32> to vector<8x128xf32>
      %69 = arith.mulf %67, %68 : vector<8x128xf32>
      %70 = vector.broadcast %59 : vector<1x128xf32> to vector<8x128xf32>
      %71 = arith.addf %69, %70 : vector<8x128xf32>
      %c8_i32_43 = arith.constant 8 : i32
      %72 = arith.muli %63, %c8_i32_43 : i32
      %73 = tpu.iota {dimensions = array<i32: 0>} : vector<8x1xi32>
      %74 = vector.broadcast %72 : i32 to vector<8x1xi32>
      %75 = arith.addi %74, %73 : vector<8x1xi32>
      %c8_i32_44 = arith.constant 8 : i32
      %76 = vector.broadcast %c8_i32_44 : i32 to vector<8x1xi32>
      %77 = arith.cmpi slt, %75, %76 : vector<8x1xi32>
      %78 = arith.extui %77 : vector<8x1xi1> to vector<8x1xi32>
      %79 = arith.sitofp %78 : vector<8x1xi32> to vector<8x1xf32>
      %80 = vector.broadcast %79 : vector<8x1xf32> to vector<8x128xf32>
      %81 = arith.mulf %71, %80 : vector<8x128xf32>
      %82 = arith.index_cast %65 : i32 to index
      %c0_45 = arith.constant 0 : index
      %83 = vector.load %arg19[%82, %c0_45] : memref<8x128xf32, #tpu.memory_space<vmem>>, vector<8x128xf32>
      tpu.vector_store %arg19[%82, %c0_45], %81 {strides = array<i32>} : memref<8x128xf32, #tpu.memory_space<vmem>>, vector<8x128xf32>,
      %84 = arith.index_cast %65 : i32 to index
      %c0_46 = arith.constant 0 : index
      %85 = vector.load %arg5[%84, %c0_46] : memref<8x8xbf16, #tpu.memory_space<vmem>>, vector<8x8xbf16>
      %86 = arith.extf %85 : vector<8x8xbf16> to vector<8x8xf32>
      %c0_47 = arith.constant 0 : index
      %c0_48 = arith.constant 0 : index
      %87 = vector.load %arg23[%c0_47, %c0_48] : memref<8x128xf32, #tpu.memory_space<vmem>>, vector<8x128xf32>
      %cst_49 = arith.constant dense<0.000000e+00> : vector<8x128xf32>
      %88 = tpu.matmul %86, %81, %cst_49 {dimension_numbers = #tpu.dot_dimension_numbers<[0], [0], [1], [1], [0, 1, 1, 1], [], []>} : vector<8x8xf32>, vector<8x128xf32>, vector<8x128xf32> -> vector<8x128xf32>
      %89 = arith.addf %87, %88 : vector<8x128xf32>
      %c0_50 = arith.constant 0 : index
      %c0_51 = arith.constant 0 : index
      %90 = vector.load %arg23[%c0_50, %c0_51] : memref<8x128xf32, #tpu.memory_space<vmem>>, vector<8x128xf32>
      tpu.vector_store %arg23[%c0_50, %c0_51], %89 {strides = array<i32>} : memref<8x128xf32, #tpu.memory_space<vmem>>, vector<8x128xf32>,
      %c1_i32_52 = arith.constant 1 : i32
      %c0_53 = arith.constant 0 : index
      %c0_54 = arith.constant 0 : index
      %91 = vector.load %arg23[%c0_53, %c0_54] : memref<8x128xf32, #tpu.memory_space<vmem>>, vector<8x128xf32>
      %92 = arith.index_cast %arg0 : i32 to index
      %c0_55 = arith.constant 0 : index
      %c0_56 = arith.constant 0 : index
      %93 = vector.load %arg24[%92, %c0_55, %c0_56] : memref<3x8x128xf32, #tpu.memory_space<vmem>>, vector<1x8x128xf32>
      %94 = vector.shape_cast %93 : vector<1x8x128xf32> to vector<8x128xf32>
      %95 = vector.shape_cast %91 : vector<8x128xf32> to vector<1x8x128xf32>
      tpu.vector_store %arg24[%92, %c0_55, %c0_56], %95 {strides = array<i32>} : memref<3x8x128xf32, #tpu.memory_space<vmem>>, vector<1x8x128xf32>,
    } else {
    }
    %c2_i32 = arith.constant 2 : i32
    %33 = arith.cmpi eq, %arg0, %c2_i32 : i32
    %c0_i32_19 = arith.constant 0 : i32
    %34 = arith.cmpi eq, %arg1, %c0_i32_19 : i32
    %35 = arith.andi %33, %34 : i1
    %c0_i32_20 = arith.constant 0 : i32
    %36 = arith.cmpi eq, %arg2, %c0_i32_20 : i32
    %37 = arith.andi %35, %36 : i1
    %38 = arith.extui %37 : i1 to i32
    %c0_i32_21 = arith.constant 0 : i32
    %39 = arith.cmpi ne, %38, %c0_i32_21 : i32
    scf.if %39 {
      %c0_22 = arith.constant 0 : index
      %c0_23 = arith.constant 0 : index
      %c0_24 = arith.constant 0 : index
      %40 = vector.load %arg24[%c0_22, %c0_23, %c0_24] : memref<3x8x128xf32, #tpu.memory_space<vmem>>, vector<1x8x128xf32>
      %41 = vector.shape_cast %40 : vector<1x8x128xf32> to vector<8x128xf32>
      %c1 = arith.constant 1 : index
      %c0_25 = arith.constant 0 : index
      %c0_26 = arith.constant 0 : index
      %42 = vector.load %arg24[%c1, %c0_25, %c0_26] : memref<3x8x128xf32, #tpu.memory_space<vmem>>, vector<1x8x128xf32>
      %43 = vector.shape_cast %42 : vector<1x8x128xf32> to vector<8x128xf32>
      %c2 = arith.constant 2 : index
      %c0_27 = arith.constant 0 : index
      %c0_28 = arith.constant 0 : index
      %44 = vector.load %arg24[%c2, %c0_27, %c0_28] : memref<3x8x128xf32, #tpu.memory_space<vmem>>, vector<1x8x128xf32>
      %45 = vector.shape_cast %44 : vector<1x8x128xf32> to vector<8x128xf32>
      %46 = tpu.concatenate %41, %43, %45 in 1 : vector<8x128xf32>, vector<8x128xf32>, vector<8x128xf32> -> vector<8x384xf32>
      %c0_29 = arith.constant 0 : index
      %c0_30 = arith.constant 0 : index
      %47 = vector.load %arg12[%c0_29, %c0_30] : memref<384x384xf32, #tpu.memory_space<vmem>>, vector<384x384xf32>
      %cst_31 = arith.constant dense<0.000000e+00> : vector<8x384xf32>
      %48 = tpu.matmul %46, %47, %cst_31 {dimension_numbers = #tpu.dot_dimension_numbers<[1], [0], [0], [1], [0, 0, 1, 1], [], []>} : vector<8x384xf32>, vector<384x384xf32>, vector<8x384xf32> -> vector<8x384xf32>
      %c0_32 = arith.constant 0 : index
      %c0_33 = arith.constant 0 : index
      %49 = vector.load %arg13[%c0_32, %c0_33] : memref<1x384xf32, #tpu.memory_space<vmem>>, vector<1x384xf32>
      %50 = vector.broadcast %49 : vector<1x384xf32> to vector<8x384xf32>
      %51 = arith.addf %48, %50 : vector<8x384xf32>
      %cst_34 = arith.constant 0.000000e+00 : f32
      %52 = vector.broadcast %cst_34 : f32 to vector<8x384xf32>
      %53 = arith.maximumf %51, %52 : vector<8x384xf32>
      %c0_35 = arith.constant 0 : index
      %c0_36 = arith.constant 0 : index
      %54 = vector.load %arg14[%c0_35, %c0_36] : memref<384x384xf32, #tpu.memory_space<vmem>>, vector<384x384xf32>
      %cst_37 = arith.constant dense<0.000000e+00> : vector<8x384xf32>
      %55 = tpu.matmul %53, %54, %cst_37 {dimension_numbers = #tpu.dot_dimension_numbers<[1], [0], [0], [1], [0, 0, 1, 1], [], []>} : vector<8x384xf32>, vector<384x384xf32>, vector<8x384xf32> -> vector<8x384xf32>
      %c0_38 = arith.constant 0 : index
      %c0_39 = arith.constant 0 : index
      %56 = vector.load %arg15[%c0_38, %c0_39] : memref<1x384xf32, #tpu.memory_space<vmem>>, vector<1x384xf32>
      %57 = vector.broadcast %56 : vector<1x384xf32> to vector<8x384xf32>
      %58 = arith.addf %55, %57 : vector<8x384xf32>
      %59 = arith.mulf %58, %58 : vector<8x384xf32>
      %cst_40 = arith.constant dense<0.000000e+00> : vector<8xf32>
      %60 = vector.multi_reduction <add>, %59, %cst_40 [1] : vector<8x384xf32> to vector<8xf32>
      %61 = vector.shape_cast %60 : vector<8xf32> to vector<8x1xf32>
      %cst_41 = arith.constant 1.000000e-24 : f32
      %62 = vector.broadcast %cst_41 : f32 to vector<8x1xf32>
      %63 = arith.maximumf %61, %62 : vector<8x1xf32>
      %64 = math.rsqrt %63 : vector<8x1xf32>
      %65 = vector.broadcast %64 : vector<8x1xf32> to vector<8x384xf32>
      %66 = arith.mulf %58, %65 : vector<8x384xf32>
      %c0_42 = arith.constant 0 : index
      %c0_43 = arith.constant 0 : index
      %67 = vector.load %arg16[%c0_42, %c0_43] : memref<8x384xf32, #tpu.memory_space<vmem>>, vector<8x384xf32>
      tpu.vector_store %arg16[%c0_42, %c0_43], %66 {strides = array<i32>} : memref<8x384xf32, #tpu.memory_space<vmem>>, vector<8x384xf32>,
      %68 = arith.mulf %46, %46 : vector<8x384xf32>
      %cst_44 = arith.constant dense<0.000000e+00> : vector<8xf32>
      %69 = vector.multi_reduction <add>, %68, %cst_44 [1] : vector<8x384xf32> to vector<8xf32>
      %70 = vector.shape_cast %69 : vector<8xf32> to vector<8x1xf32>
      %cst_45 = arith.constant 1.000000e-24 : f32
      %71 = vector.broadcast %cst_45 : f32 to vector<8x1xf32>
      %72 = arith.maximumf %70, %71 : vector<8x1xf32>
      %73 = math.rsqrt %72 : vector<8x1xf32>
      %74 = vector.broadcast %73 : vector<8x1xf32> to vector<8x384xf32>
      %75 = arith.mulf %46, %74 : vector<8x384xf32>
      %c0_46 = arith.constant 0 : index
      %c0_47 = arith.constant 0 : index
      %76 = vector.load %arg17[%c0_46, %c0_47] : memref<8x384xf32, #tpu.memory_space<vmem>>, vector<8x384xf32>
      tpu.vector_store %arg17[%c0_46, %c0_47], %75 {strides = array<i32>} : memref<8x384xf32, #tpu.memory_space<vmem>>, vector<8x384xf32>,
    } else {
    }
    return
  }
  func.func @transform_0(%arg0: i32, %arg1: i32, %arg2: i32) -> (i32, i32) {
    %c0_i32 = arith.constant 0 : i32
    return %arg1, %arg2 : i32, i32
  }
  func.func @transform_1(%arg0: i32, %arg1: i32, %arg2: i32) -> (i32, i32) {
    %c0_i32 = arith.constant 0 : i32
    %c0_i32_0 = arith.constant 0 : i32
    %c0_i32_1 = arith.constant 0 : i32
    return %c0_i32, %c0_i32_0 : i32, i32
  }
  func.func @transform_2(%arg0: i32, %arg1: i32, %arg2: i32) -> (i32, i32) {
    %c0_i32 = arith.constant 0 : i32
    %c0_i32_0 = arith.constant 0 : i32
    %c0_i32_1 = arith.constant 0 : i32
    return %c0_i32, %c0_i32_0 : i32, i32
  }
  func.func @transform_3(%arg0: i32, %arg1: i32, %arg2: i32) -> (i32, i32, i32) {
    %c0_i32 = arith.constant 0 : i32
    %c0_i32_0 = arith.constant 0 : i32
    %c0_i32_1 = arith.constant 0 : i32
    return %arg0, %c0_i32, %c0_i32_0 : i32, i32, i32
  }
  func.func @transform_4(%arg0: i32, %arg1: i32, %arg2: i32) -> (i32, i32, i32) {
    %c0_i32 = arith.constant 0 : i32
    %c0_i32_0 = arith.constant 0 : i32
    %c0_i32_1 = arith.constant 0 : i32
    return %arg0, %c0_i32, %c0_i32_0 : i32, i32, i32
  }
  func.func @transform_5(%arg0: i32, %arg1: i32, %arg2: i32) -> (i32, i32, i32) {
    %c0_i32 = arith.constant 0 : i32
    %c0_i32_0 = arith.constant 0 : i32
    %c0_i32_1 = arith.constant 0 : i32
    return %arg0, %c0_i32, %c0_i32_0 : i32, i32, i32
  }
  func.func @transform_6(%arg0: i32, %arg1: i32, %arg2: i32) -> (i32, i32, i32) {
    %c0_i32 = arith.constant 0 : i32
    %c0_i32_0 = arith.constant 0 : i32
    %c0_i32_1 = arith.constant 0 : i32
    return %arg0, %c0_i32, %c0_i32_0 : i32, i32, i32
  }
  func.func @transform_7(%arg0: i32, %arg1: i32, %arg2: i32) -> (i32, i32, i32) {
    %c0_i32 = arith.constant 0 : i32
    %c0_i32_0 = arith.constant 0 : i32
    %c0_i32_1 = arith.constant 0 : i32
    return %arg0, %c0_i32, %c0_i32_0 : i32, i32, i32
  }
  func.func @transform_8(%arg0: i32, %arg1: i32, %arg2: i32) -> (i32, i32, i32) {
    %c0_i32 = arith.constant 0 : i32
    %c0_i32_0 = arith.constant 0 : i32
    %c0_i32_1 = arith.constant 0 : i32
    return %arg0, %c0_i32, %c0_i32_0 : i32, i32, i32
  }
  func.func @transform_9(%arg0: i32, %arg1: i32, %arg2: i32) -> (i32, i32) {
    %c0_i32 = arith.constant 0 : i32
    %c0_i32_0 = arith.constant 0 : i32
    %c0_i32_1 = arith.constant 0 : i32
    return %c0_i32, %c0_i32_0 : i32, i32
  }
  func.func @transform_10(%arg0: i32, %arg1: i32, %arg2: i32) -> (i32, i32) {
    %c0_i32 = arith.constant 0 : i32
    %c0_i32_0 = arith.constant 0 : i32
    %c0_i32_1 = arith.constant 0 : i32
    return %c0_i32, %c0_i32_0 : i32, i32
  }
  func.func @transform_11(%arg0: i32, %arg1: i32, %arg2: i32) -> (i32, i32) {
    %c0_i32 = arith.constant 0 : i32
    %c0_i32_0 = arith.constant 0 : i32
    %c0_i32_1 = arith.constant 0 : i32
    return %c0_i32, %c0_i32_0 : i32, i32
  }
  func.func @transform_12(%arg0: i32, %arg1: i32, %arg2: i32) -> (i32, i32) {
    %c0_i32 = arith.constant 0 : i32
    %c0_i32_0 = arith.constant 0 : i32
    %c0_i32_1 = arith.constant 0 : i32
    return %c0_i32, %c0_i32_0 : i32, i32
  }
  func.func @transform_13(%arg0: i32, %arg1: i32, %arg2: i32) -> (i32, i32) {
    %c0_i32 = arith.constant 0 : i32
    %c0_i32_0 = arith.constant 0 : i32
    %c0_i32_1 = arith.constant 0 : i32
    return %c0_i32, %c0_i32_0 : i32, i32
  }
  func.func @transform_14(%arg0: i32, %arg1: i32, %arg2: i32) -> (i32, i32) {
    %c0_i32 = arith.constant 0 : i32
    %c0_i32_0 = arith.constant 0 : i32
    %c0_i32_1 = arith.constant 0 : i32
    return %c0_i32, %c0_i32_0 : i32, i32
  }
}

</mosaic_0001>

<llo_original>
// kernel: tpu_custom_call.1
$region0: #{tpu_custom_call.1}
  #allocation0 [shape = 'u32[]', space=smem, size = 0x4, offset = 0x4, fixed_abs, tag = 'smem constant byte address 0x4 - core index']
  #allocation1 [shape = 'u32[144,128]{1,0:T(1,128)}', space=vmem, size = 0x12000, scoped, tag = 'internal scratch']
  #allocation2 [shape = 'f32[8,128]{1,0:T(8,128)}', space=vmem, size = 0x1000, scoped, tag = 'scratch operand']
  #allocation3 [shape = 'f32[8,128]{1,0:T(8,128)}', space=vmem, size = 0x1000, scoped, tag = 'scratch operand']
  #allocation4 [shape = 'f32[8,128]{1,0:T(8,128)}', space=vmem, size = 0x1000, scoped, tag = 'scratch operand']
  #allocation5 [shape = 'f32[1,128]{1,0:T(1,128)}', space=vmem, size = 0x200, scoped, tag = 'scratch operand']
  #allocation6 [shape = 'f32[1,128]{1,0:T(1,128)}', space=vmem, size = 0x200, scoped, tag = 'scratch operand']
  #allocation7 [shape = 'f32[8,128]{1,0:T(8,128)}', space=vmem, size = 0x1000, scoped, tag = 'scratch operand']
  #allocation8 [shape = 'f32[3,8,128]{2,1,0:T(8,128)}', space=vmem, size = 0x3000, scoped, tag = 'scratch operand']
  %s0 = inlined_call_operand.hbm [shape: bf16[8,8], index: 0, kind: input, shape index: {}]
  %s1 = inlined_call_operand.hbm [shape: f32[8,128], index: 1, kind: input, shape index: {}]
  %s2 = inlined_call_operand.hbm [shape: bf16[8,8], index: 2, kind: input, shape index: {}]
  %s3 = inlined_call_operand.hbm [shape: f32[3,128,128], index: 3, kind: input, shape index: {}]
  %s4 = inlined_call_operand.vmem [shape: f32[3,1,128], index: 4, kind: input, shape index: {}]
  %s5 = inlined_call_operand.hbm [shape: f32[3,128,128], index: 5, kind: input, shape index: {}]
  %s6 = inlined_call_operand.vmem [shape: f32[3,1,128], index: 6, kind: input, shape index: {}]
  %s7 = inlined_call_operand.vmem [shape: f32[3,1,128], index: 7, kind: input, shape index: {}]
  %s8 = inlined_call_operand.vmem [shape: f32[3,1,128], index: 8, kind: input, shape index: {}]
  %s9 = inlined_call_operand.hbm [shape: f32[384,384], index: 9, kind: input, shape index: {}]
  %s10 = inlined_call_operand.vmem [shape: f32[1,384], index: 10, kind: input, shape index: {}]
  %s11 = inlined_call_operand.hbm [shape: f32[384,384], index: 11, kind: input, shape index: {}]
  %s12 = inlined_call_operand.vmem [shape: f32[1,384], index: 12, kind: input, shape index: {}]
  %s13 = inlined_call_operand.hbm [shape: f32[8,384], index: 13, kind: output, shape index: {0}]
  %s14 = inlined_call_operand.hbm [shape: f32[8,384], index: 14, kind: output, shape index: {1}]
  %15 = xla_tuple %s13, %s14
  %s16 = sld [smem:[#allocation0]]
  $region145: #{tpu_custom_call.1} parent=0
    _
  %s18 = ssub.s32 1, %s16
  %s19 = scalar_select 0, %s18, %s16
  $region1: #{tpu_custom_call.1} parent=0
    #allocation9 [shape = 'u8[2048]{0}', space=vmem, size = 0x800, scoped, tag = 'input window, operand 0, single buffered']
    #allocation10 [shape = 's32[2]{0}', space=sflag, size = 0x8, scoped, tag = 'scoped memory for tpu_custom_call.1']
    #allocation11 [shape = 's32[2]{0}', space=sflag, size = 0x8, scoped, tag = 'scoped memory for tpu_custom_call.1']
    #allocation12 [shape = 'u8[4096]{0}', space=vmem, size = 0x1000, scoped, tag = 'input window, operand 1, single buffered']
    #allocation13 [shape = 's32[1]{0}', space=sflag, size = 0x4, scoped, tag = 'scoped memory for tpu_custom_call.1']
    #allocation14 [shape = 'u8[2048]{0}', space=vmem, size = 0x800, scoped, tag = 'input window, operand 2, single buffered']
    #allocation15 [shape = 'u8[131072]{0}', space=vmem, size = 0x20000, scoped, tag = 'input window, operand 3']
    #allocation16 [shape = 's32[2]{0}', space=sflag, size = 0x8, scoped, tag = 'scoped memory for tpu_custom_call.1']
    #allocation17 [shape = 'u8[131072]{0}', space=vmem, size = 0x20000, scoped, tag = 'input window, operand 5']
    #allocation18 [shape = 'u8[589824]{0}', space=vmem, size = 0x90000, scoped, tag = 'input window, operand 9, single buffered']
    #allocation19 [shape = 's32[1]{0}', space=sflag, size = 0x4, scoped, tag = 'scoped memory for tpu_custom_call.1']
    #allocation20 [shape = 'u8[589824]{0}', space=vmem, size = 0x90000, scoped, tag = 'input window, operand 11, single buffered']
    #allocation21 [shape = 'u8[12288]{0}', space=vmem, size = 0x3000, scoped, tag = 'output window, operand 0, single buffered']
    #allocation22 [shape = 'u8[12288]{0}', space=vmem, size = 0x3000, scoped, tag = 'output window, operand 1, single buffered']
    #allocation23 [shape = 's32[1]{0}', space=sflag, size = 0x4, scoped, tag = 'scoped memory for tpu_custom_call.1']
    %20 = vsyncpa [#allocation10], 0
    %21 = vsyncpa [#allocation13], 0
    %22 = vsyncpa [#allocation16], 0
    %s23 = scalar_lea.sflag [#allocation16], 1
    %24 = vsyncpa %s23, 0
    %25 = vsyncpa [#allocation19], 0
    %26 = vsyncpa [#allocation11], 0
    %27 = vsyncpa [#allocation23], 0
    loop: start=0, step=1, limit=5
    $region2: #{tpu_custom_call.1} parent=1 // loop_pre_header
      _
    $region3: #{tpu_custom_call.1} parent=1 // loop_header
      %s29 = sphi 0, %s33
      %p30 = scmp.ge.s32.totalorder %s29, 5
      %s36 = sphi 0, %s55
      %s37 = sphi 0, %s51
      %s38 = sphi 0, %s47
      %s39 = sphi 0, %s36
      %s40 = sphi 0, %s37
      %s41 = sphi 0, %s38
      %s42 = sphi 0, %s39
      %s43 = sphi 0, %s40
      %s44 = sphi 0, %s41
      %s60 = sphi 0, %s62
      %s63 = sphi 0, %s60
      %s64 = sphi 0, %s63
      %s80 = sphi 0, %s64
      %s84 = sphi 0, %s84
      %s86 = sphi 0, %s84
      %s87 = sphi 0, %s86
      %s101 = sphi 0, %s87
      %s105 = sphi 0, %s105
      %s107 = sphi 0, %s105
      %s108 = sphi 0, %s107
      %s122 = sphi 0, %s108
      %s128 = sphi 0, %s130
      %s131 = sphi 0, %s128
      %s132 = sphi 0, %s131
      %s148 = sphi 0, %s132
      %s154 = sphi 0, %s156
      %s157 = sphi 0, %s154
      %s158 = sphi 0, %s157
      %s174 = sphi 0, %s158
      %s180 = sphi 0, %s182
      %s183 = sphi 0, %s180
      %s184 = sphi 0, %s183
      %s200 = sphi 0, %s184
      %s206 = sphi 0, %s208
      %s209 = sphi 0, %s206
      %s210 = sphi 0, %s209
      %s226 = sphi 0, %s210
      %s232 = sphi 0, %s234
      %s235 = sphi 0, %s232
      %s236 = sphi 0, %s235
      %s252 = sphi 0, %s236
      %s258 = sphi 0, %s260
      %s261 = sphi 0, %s258
      %s262 = sphi 0, %s261
      %s278 = sphi 0, %s262
      %s282 = sphi 0, %s282
      %s284 = sphi 0, %s282
      %s285 = sphi 0, %s284
      %s299 = sphi 0, %s285
      %s303 = sphi 0, %s303
      %s305 = sphi 0, %s303
      %s306 = sphi 0, %s305
      %s320 = sphi 0, %s306
      %s324 = sphi 0, %s324
      %s326 = sphi 0, %s324
      %s327 = sphi 0, %s326
      %s341 = sphi 0, %s327
      %s345 = sphi 0, %s345
      %s347 = sphi 0, %s345
      %s348 = sphi 0, %s347
      %s362 = sphi 0, %s348
      %s366 = sphi 0, %s366
      %s368 = sphi 0, %s366
      %s369 = sphi 0, %s368
      %s383 = sphi 0, %s369
      %s387 = sphi 0, %s387
      %s389 = sphi 0, %s387
      %s390 = sphi 0, %s389
      %s404 = sphi 0, %s390
    $region4: #{tpu_custom_call.1} parent=1 // loop_header_branch
      %32 = sbr.rel (%p30) target = $region8
    $region5: #{tpu_custom_call.1} parent=1 // loop_body
      %s34 = ssub.s32 %s29, 1
      %s35 = ssub.s32 %s29, 2
      %s45 = sadd.s32 1, %s38
      %p46 = scmp.ge.s32.totalorder %s45, 1
      %s47 = scalar_select %p46, 0, %s45
      %s48 = sadd.s32 1, %s37
      %s49 = scalar_select %p46, %s48, %s37
      %p50 = scmp.ge.s32.totalorder %s49, 1
      %s51 = scalar_select %p50, 0, %s49
      %s52 = sadd.s32 1, %s36
      %s53 = scalar_select %p50, %s52, %s36
      %p54 = scmp.ge.s32.totalorder %s53, 3
      %s55 = scalar_select %p54, 0, %s53
      %s56 = ssub.s32 %s37, %s51
      %s57 = ssub.s32 %s38, %s47
      %s58 = sor.u32 %s56, %s57
      %p59 = scmp.eq.s32.totalorder %s58, 0
      %s61 = sadd.s32 %s60, 1
      %s62 = scalar_select %p59, %s60, %s61
      %p65 = pneg %p59
      %p66 = scmp.eq.s32.totalorder %s29, 2
      %p67 = por %p65, %p66
      %p68 = scmp.ne.s32.totalorder %s60, %s63
      %p69 = scmp.eq.s32.totalorder %s29, 0
      %p70 = por %p68, %p69
      %p71 = scmp.ne.s32.totalorder %s60, %s63
      %p72 = scmp.eq.s32.totalorder %s34, 2
      %p73 = por %p71, %p72
      %p74 = scmp.ne.s32.totalorder %s63, %s64
      %p75 = scmp.eq.s32.totalorder %s34, 0
      %p76 = por %p74, %p75
      %p77 = scmp.ne.s32.totalorder %s63, %s64
      %p78 = scmp.eq.s32.totalorder %s35, 2
      %p79 = por %p77, %p78
      %p81 = scmp.ne.s32.totalorder %s64, %s80
      %p82 = scmp.eq.s32.totalorder %s35, 0
      %p83 = por %p81, %p82
      %s85 = sadd.s32 %s84, 1
      %p88 = scmp.eq.s32.totalorder %s29, 2
      %p89 = scmp.ne.s32.totalorder %s84, %s86
      %p90 = scmp.eq.s32.totalorder %s29, 0
      %p91 = por %p89, %p90
      %p92 = scmp.ne.s32.totalorder %s84, %s86
      %p93 = scmp.eq.s32.totalorder %s34, 2
      %p94 = por %p92, %p93
      %p95 = scmp.ne.s32.totalorder %s86, %s87
      %p96 = scmp.eq.s32.totalorder %s34, 0
      %p97 = por %p95, %p96
      %p98 = scmp.ne.s32.totalorder %s86, %s87
      %p99 = scmp.eq.s32.totalorder %s35, 2
      %p100 = por %p98, %p99
      %p102 = scmp.ne.s32.totalorder %s87, %s101
      %p103 = scmp.eq.s32.totalorder %s35, 0
      %p104 = por %p102, %p103
      %s106 = sadd.s32 %s105, 1
      %p109 = scmp.eq.s32.totalorder %s29, 2
      %p110 = scmp.ne.s32.totalorder %s105, %s107
      %p111 = scmp.eq.s32.totalorder %s29, 0
      %p112 = por %p110, %p111
      %p113 = scmp.ne.s32.totalorder %s105, %s107
      %p114 = scmp.eq.s32.totalorder %s34, 2
      %p115 = por %p113, %p114
      %p116 = scmp.ne.s32.totalorder %s107, %s108
      %p117 = scmp.eq.s32.totalorder %s34, 0
      %p118 = por %p116, %p117
      %p119 = scmp.ne.s32.totalorder %s107, %s108
      %p120 = scmp.eq.s32.totalorder %s35, 2
      %p121 = por %p119, %p120
      %p123 = scmp.ne.s32.totalorder %s108, %s122
      %p124 = scmp.eq.s32.totalorder %s35, 0
      %p125 = por %p123, %p124
      %s126 = ssub.s32 %s36, %s55
      %p127 = scmp.eq.s32.totalorder %s126, 0
      %s129 = sadd.s32 %s128, 1
      %s130 = scalar_select %p127, %s128, %s129
      %p133 = pneg %p127
      %p134 = scmp.eq.s32.totalorder %s29, 2
      %p135 = por %p133, %p134
      %p136 = scmp.ne.s32.totalorder %s128, %s131
      %p137 = scmp.eq.s32.totalorder %s29, 0
      %p138 = por %p136, %p137
      %p139 = scmp.ne.s32.totalorder %s128, %s131
      %p140 = scmp.eq.s32.totalorder %s34, 2
      %p141 = por %p139, %p140
      %p142 = scmp.ne.s32.totalorder %s131, %s132
      %p143 = scmp.eq.s32.totalorder %s34, 0
      %p144 = por %p142, %p143
      %p145 = scmp.ne.s32.totalorder %s131, %s132
      %p146 = scmp.eq.s32.totalorder %s35, 2
      %p147 = por %p145, %p146
      %p149 = scmp.ne.s32.totalorder %s132, %s148
      %p150 = scmp.eq.s32.totalorder %s35, 0
      %p151 = por %p149, %p150
      %s152 = ssub.s32 %s36, %s55
      %p153 = scmp.eq.s32.totalorder %s152, 0
      %s155 = sadd.s32 %s154, 1
      %s156 = scalar_select %p153, %s154, %s155
      %p159 = pneg %p153
      %p160 = scmp.eq.s32.totalorder %s29, 2
      %p161 = por %p159, %p160
      %p162 = scmp.ne.s32.totalorder %s154, %s157
      %p163 = scmp.eq.s32.totalorder %s29, 0
      %p164 = por %p162, %p163
      %p165 = scmp.ne.s32.totalorder %s154, %s157
      %p166 = scmp.eq.s32.totalorder %s34, 2
      %p167 = por %p165, %p166
      %p168 = scmp.ne.s32.totalorder %s157, %s158
      %p169 = scmp.eq.s32.totalorder %s34, 0
      %p170 = por %p168, %p169
      %p171 = scmp.ne.s32.totalorder %s157, %s158
      %p172 = scmp.eq.s32.totalorder %s35, 2
      %p173 = por %p171, %p172
      %p175 = scmp.ne.s32.totalorder %s158, %s174
      %p176 = scmp.eq.s32.totalorder %s35, 0
      %p177 = por %p175, %p176
      %s178 = ssub.s32 %s36, %s55
      %p179 = scmp.eq.s32.totalorder %s178, 0
      %s181 = sadd.s32 %s180, 1
      %s182 = scalar_select %p179, %s180, %s181
      %p185 = pneg %p179
      %p186 = scmp.eq.s32.totalorder %s29, 2
      %p187 = por %p185, %p186
      %p188 = scmp.ne.s32.totalorder %s180, %s183
      %p189 = scmp.eq.s32.totalorder %s29, 0
      %p190 = por %p188, %p189
      %p191 = scmp.ne.s32.totalorder %s180, %s183
      %p192 = scmp.eq.s32.totalorder %s34, 2
      %p193 = por %p191, %p192
      %p194 = scmp.ne.s32.totalorder %s183, %s184
      %p195 = scmp.eq.s32.totalorder %s34, 0
      %p196 = por %p194, %p195
      %p197 = scmp.ne.s32.totalorder %s183, %s184
      %p198 = scmp.eq.s32.totalorder %s35, 2
      %p199 = por %p197, %p198
      %p201 = scmp.ne.s32.totalorder %s184, %s200
      %p202 = scmp.eq.s32.totalorder %s35, 0
      %p203 = por %p201, %p202
      %s204 = ssub.s32 %s36, %s55
      %p205 = scmp.eq.s32.totalorder %s204, 0
      %s207 = sadd.s32 %s206, 1
      %s208 = scalar_select %p205, %s206, %s207
      %p211 = pneg %p205
      %p212 = scmp.eq.s32.totalorder %s29, 2
      %p213 = por %p211, %p212
      %p214 = scmp.ne.s32.totalorder %s206, %s209
      %p215 = scmp.eq.s32.totalorder %s29, 0
      %p216 = por %p214, %p215
      %p217 = scmp.ne.s32.totalorder %s206, %s209
      %p218 = scmp.eq.s32.totalorder %s34, 2
      %p219 = por %p217, %p218
      %p220 = scmp.ne.s32.totalorder %s209, %s210
      %p221 = scmp.eq.s32.totalorder %s34, 0
      %p222 = por %p220, %p221
      %p223 = scmp.ne.s32.totalorder %s209, %s210
      %p224 = scmp.eq.s32.totalorder %s35, 2
      %p225 = por %p223, %p224
      %p227 = scmp.ne.s32.totalorder %s210, %s226
      %p228 = scmp.eq.s32.totalorder %s35, 0
      %p229 = por %p227, %p228
      %s230 = ssub.s32 %s36, %s55
      %p231 = scmp.eq.s32.totalorder %s230, 0
      %s233 = sadd.s32 %s232, 1
      %s234 = scalar_select %p231, %s232, %s233
      %p237 = pneg %p231
      %p238 = scmp.eq.s32.totalorder %s29, 2
      %p239 = por %p237, %p238
      %p240 = scmp.ne.s32.totalorder %s232, %s235
      %p241 = scmp.eq.s32.totalorder %s29, 0
      %p242 = por %p240, %p241
      %p243 = scmp.ne.s32.totalorder %s232, %s235
      %p244 = scmp.eq.s32.totalorder %s34, 2
      %p245 = por %p243, %p244
      %p246 = scmp.ne.s32.totalorder %s235, %s236
      %p247 = scmp.eq.s32.totalorder %s34, 0
      %p248 = por %p246, %p247
      %p249 = scmp.ne.s32.totalorder %s235, %s236
      %p250 = scmp.eq.s32.totalorder %s35, 2
      %p251 = por %p249, %p250
      %p253 = scmp.ne.s32.totalorder %s236, %s252
      %p254 = scmp.eq.s32.totalorder %s35, 0
      %p255 = por %p253, %p254
      %s256 = ssub.s32 %s36, %s55
      %p257 = scmp.eq.s32.totalorder %s256, 0
      %s259 = sadd.s32 %s258, 1
      %s260 = scalar_select %p257, %s258, %s259
      %p263 = pneg %p257
      %p264 = scmp.eq.s32.totalorder %s29, 2
      %p265 = por %p263, %p264
      %p266 = scmp.ne.s32.totalorder %s258, %s261
      %p267 = scmp.eq.s32.totalorder %s29, 0
      %p268 = por %p266, %p267
      %p269 = scmp.ne.s32.totalorder %s258, %s261
      %p270 = scmp.eq.s32.totalorder %s34, 2
      %p271 = por %p269, %p270
      %p272 = scmp.ne.s32.totalorder %s261, %s262
      %p273 = scmp.eq.s32.totalorder %s34, 0
      %p274 = por %p272, %p273
      %p275 = scmp.ne.s32.totalorder %s261, %s262
      %p276 = scmp.eq.s32.totalorder %s35, 2
      %p277 = por %p275, %p276
      %p279 = scmp.ne.s32.totalorder %s262, %s278
      %p280 = scmp.eq.s32.totalorder %s35, 0
      %p281 = por %p279, %p280
      %s283 = sadd.s32 %s282, 1
      %p286 = scmp.eq.s32.totalorder %s29, 2
      %p287 = scmp.ne.s32.totalorder %s282, %s284
      %p288 = scmp.eq.s32.totalorder %s29, 0
      %p289 = por %p287, %p288
      %p290 = scmp.ne.s32.totalorder %s282, %s284
      %p291 = scmp.eq.s32.totalorder %s34, 2
      %p292 = por %p290, %p291
      %p293 = scmp.ne.s32.totalorder %s284, %s285
      %p294 = scmp.eq.s32.totalorder %s34, 0
      %p295 = por %p293, %p294
      %p296 = scmp.ne.s32.totalorder %s284, %s285
      %p297 = scmp.eq.s32.totalorder %s35, 2
      %p298 = por %p296, %p297
      %p300 = scmp.ne.s32.totalorder %s285, %s299
      %p301 = scmp.eq.s32.totalorder %s35, 0
      %p302 = por %p300, %p301
      %s304 = sadd.s32 %s303, 1
      %p307 = scmp.eq.s32.totalorder %s29, 2
      %p308 = scmp.ne.s32.totalorder %s303, %s305
      %p309 = scmp.eq.s32.totalorder %s29, 0
      %p310 = por %p308, %p309
      %p311 = scmp.ne.s32.totalorder %s303, %s305
      %p312 = scmp.eq.s32.totalorder %s34, 2
      %p313 = por %p311, %p312
      %p314 = scmp.ne.s32.totalorder %s305, %s306
      %p315 = scmp.eq.s32.totalorder %s34, 0
      %p316 = por %p314, %p315
      %p317 = scmp.ne.s32.totalorder %s305, %s306
      %p318 = scmp.eq.s32.totalorder %s35, 2
      %p319 = por %p317, %p318
      %p321 = scmp.ne.s32.totalorder %s306, %s320
      %p322 = scmp.eq.s32.totalorder %s35, 0
      %p323 = por %p321, %p322
      %s325 = sadd.s32 %s324, 1
      %p328 = scmp.eq.s32.totalorder %s29, 2
      %p329 = scmp.ne.s32.totalorder %s324, %s326
      %p330 = scmp.eq.s32.totalorder %s29, 0
      %p331 = por %p329, %p330
      %p332 = scmp.ne.s32.totalorder %s324, %s326
      %p333 = scmp.eq.s32.totalorder %s34, 2
      %p334 = por %p332, %p333
      %p335 = scmp.ne.s32.totalorder %s326, %s327
      %p336 = scmp.eq.s32.totalorder %s34, 0
      %p337 = por %p335, %p336
      %p338 = scmp.ne.s32.totalorder %s326, %s327
      %p339 = scmp.eq.s32.totalorder %s35, 2
      %p340 = por %p338, %p339
      %p342 = scmp.ne.s32.totalorder %s327, %s341
      %p343 = scmp.eq.s32.totalorder %s35, 0
      %p344 = por %p342, %p343
      %s346 = sadd.s32 %s345, 1
      %p349 = scmp.eq.s32.totalorder %s29, 2
      %p350 = scmp.ne.s32.totalorder %s345, %s347
      %p351 = scmp.eq.s32.totalorder %s29, 0
      %p352 = por %p350, %p351
      %p353 = scmp.ne.s32.totalorder %s345, %s347
      %p354 = scmp.eq.s32.totalorder %s34, 2
      %p355 = por %p353, %p354
      %p356 = scmp.ne.s32.totalorder %s347, %s348
      %p357 = scmp.eq.s32.totalorder %s34, 0
      %p358 = por %p356, %p357
      %p359 = scmp.ne.s32.totalorder %s347, %s348
      %p360 = scmp.eq.s32.totalorder %s35, 2
      %p361 = por %p359, %p360
      %p363 = scmp.ne.s32.totalorder %s348, %s362
      %p364 = scmp.eq.s32.totalorder %s35, 0
      %p365 = por %p363, %p364
      %s367 = sadd.s32 %s366, 1
      %p370 = scmp.eq.s32.totalorder %s29, 2
      %p371 = scmp.ne.s32.totalorder %s366, %s368
      %p372 = scmp.eq.s32.totalorder %s29, 0
      %p373 = por %p371, %p372
      %p374 = scmp.ne.s32.totalorder %s366, %s368
      %p375 = scmp.eq.s32.totalorder %s34, 2
      %p376 = por %p374, %p375
      %p377 = scmp.ne.s32.totalorder %s368, %s369
      %p378 = scmp.eq.s32.totalorder %s34, 0
      %p379 = por %p377, %p378
      %p380 = scmp.ne.s32.totalorder %s368, %s369
      %p381 = scmp.eq.s32.totalorder %s35, 2
      %p382 = por %p380, %p381
      %p384 = scmp.ne.s32.totalorder %s369, %s383
      %p385 = scmp.eq.s32.totalorder %s35, 0
      %p386 = por %p384, %p385
      %s388 = sadd.s32 %s387, 1
      %p391 = scmp.eq.s32.totalorder %s29, 2
      %p392 = scmp.ne.s32.totalorder %s387, %s389
      %p393 = scmp.eq.s32.totalorder %s29, 0
      %p394 = por %p392, %p393
      %p395 = scmp.ne.s32.totalorder %s387, %s389
      %p396 = scmp.eq.s32.totalorder %s34, 2
      %p397 = por %p395, %p396
      %p398 = scmp.ne.s32.totalorder %s389, %s390
      %p399 = scmp.eq.s32.totalorder %s34, 0
      %p400 = por %p398, %p399
      %p401 = scmp.ne.s32.totalorder %s389, %s390
      %p402 = scmp.eq.s32.totalorder %s35, 2
      %p403 = por %p401, %p402
      %p405 = scmp.ne.s32.totalorder %s390, %s404
      %p406 = scmp.eq.s32.totalorder %s35, 0
      %p407 = por %p405, %p406
      %p408 = scmp.le.s32.totalorder 1, %s29
      %p409 = scmp.lt.s32.totalorder %s29, 4
      %p410 = pnand %p408, %p409
      %p411 = pneg %p410
      // Predicated region
      $region9: #{tpu_custom_call.1} parent=5 // pred_check
        _
      $region10: #{tpu_custom_call.1} parent=5 // pred_check_branch
        %413 = sbr.rel (%p410) target = $region12
      $region11: #{tpu_custom_call.1} parent=5 // pred_region
        %s414 = ssub.s32 %s29, 1
        // Predicated region
        $region13: #{tpu_custom_call.1} parent=11 // pred_check
          %p415 = pneg %p76
        $region14: #{tpu_custom_call.1} parent=11 // pred_check_branch
          %417 = sbr.rel (%p415) target = $region16
        $region15: #{tpu_custom_call.1} parent=11 // pred_region
          %s419 = ssub.s32 64, 64
          %420 = vsyncadd [#allocation10], %s419
          %s421 = sadd.s32 %s41, %s40
          %s422 = smul.addr %s421, 64
          %s423 = scalar_lea.hbm %s0, %s422
          %s425 = sshll.u32 [#allocation9], 4
          %s426 = int_to_ptr.vmem [resolvable:$true] %s425
          %428 = dma.hbm_to_vmem [thread:$0]  %s423, 64, %s426, [#allocation10]
        $region16: #{tpu_custom_call.1} parent=11 // pred_fallthru
          _
        // Predicated region
        $region17: #{tpu_custom_call.1} parent=11 // pred_check
          %p429 = pneg %p97
        $region18: #{tpu_custom_call.1} parent=11 // pred_check_branch
          %431 = sbr.rel (%p429) target = $region20
        $region19: #{tpu_custom_call.1} parent=11 // pred_region
          %s433 = ssub.s32 128, 128
          %434 = vsyncadd [#allocation13], %s433
          %s436 = sshll.u32 [#allocation12], 4
          %s437 = int_to_ptr.vmem [resolvable:$true] %s436
          %439 = dma.hbm_to_vmem [thread:$0]  %s1, 128, %s437, [#allocation13]
        $region20: #{tpu_custom_call.1} parent=11 // pred_fallthru
          _
        // Predicated region
        $region21: #{tpu_custom_call.1} parent=11 // pred_check
          %p440 = pneg %p118
        $region22: #{tpu_custom_call.1} parent=11 // pred_check_branch
          %442 = sbr.rel (%p440) target = $region24
        $region23: #{tpu_custom_call.1} parent=11 // pred_region
          %s444 = ssub.s32 64, 64
          %445 = vsyncadd [#allocation13], %s444
          %s447 = sshll.u32 [#allocation14], 4
          %s448 = int_to_ptr.vmem [resolvable:$true] %s447
          %450 = dma.hbm_to_vmem [thread:$0]  %s2, 64, %s448, [#allocation13]
        $region24: #{tpu_custom_call.1} parent=11 // pred_fallthru
          _
        // Predicated region
        $region25: #{tpu_custom_call.1} parent=11 // pred_check
          %p451 = pneg %p295
        $region26: #{tpu_custom_call.1} parent=11 // pred_check_branch
          %453 = sbr.rel (%p451) target = $region28
        $region27: #{tpu_custom_call.1} parent=11 // pred_region
          %s455 = ssub.s32 18432, 18432
          %456 = vsyncadd [#allocation19], %s455
          %s457 = sshll.u32 [#allocation18], 4
          %s458 = int_to_ptr.vmem [resolvable:$true] %s457
          %463 = dma.hbm_to_vmem [thread:$0]  %s9, 18432, %s458, [#allocation19], 384, 384, 24
        $region28: #{tpu_custom_call.1} parent=11 // pred_fallthru
          _
        // Predicated region
        $region29: #{tpu_custom_call.1} parent=11 // pred_check
          %p464 = pneg %p316
        $region30: #{tpu_custom_call.1} parent=11 // pred_check_branch
          %466 = sbr.rel (%p464) target = $region32
        $region31: #{tpu_custom_call.1} parent=11 // pred_region
          _
        $region32: #{tpu_custom_call.1} parent=11 // pred_fallthru
          _
        // Predicated region
        $region33: #{tpu_custom_call.1} parent=11 // pred_check
          %p467 = pneg %p337
        $region34: #{tpu_custom_call.1} parent=11 // pred_check_branch
          %469 = sbr.rel (%p467) target = $region36
        $region35: #{tpu_custom_call.1} parent=11 // pred_region
          %s471 = ssub.s32 18432, 18432
          %472 = vsyncadd [#allocation19], %s471
          %s473 = sshll.u32 [#allocation20], 4
          %s474 = int_to_ptr.vmem [resolvable:$true] %s473
          %479 = dma.hbm_to_vmem [thread:$0]  %s11, 18432, %s474, [#allocation19], 384, 384, 24
        $region36: #{tpu_custom_call.1} parent=11 // pred_fallthru
          _
        // Predicated region
        $region37: #{tpu_custom_call.1} parent=11 // pred_check
          %p480 = pneg %p358
        $region38: #{tpu_custom_call.1} parent=11 // pred_check_branch
          %482 = sbr.rel (%p480) target = $region40
        $region39: #{tpu_custom_call.1} parent=11 // pred_region
          _
        $region40: #{tpu_custom_call.1} parent=11 // pred_fallthru
          _
      $region12: #{tpu_custom_call.1} parent=5 // pred_fallthru
        _
      %p483 = scmp.lt.s32.totalorder %s29, 3
      // Predicated region
      $region41: #{tpu_custom_call.1} parent=5 // pred_check
        %p484 = pneg %p483
      $region42: #{tpu_custom_call.1} parent=5 // pred_check_branch
        %486 = sbr.rel (%p484) target = $region44
      $region43: #{tpu_custom_call.1} parent=5 // pred_region
        // Predicated region
        $region45: #{tpu_custom_call.1} parent=43 // pred_check
          %p487 = pneg %p138
        $region46: #{tpu_custom_call.1} parent=43 // pred_check_branch
          %489 = sbr.rel (%p487) target = $region48
        $region47: #{tpu_custom_call.1} parent=43 // pred_region
          %s490 = sand.u32 %s29, 1
          %s491 = scalar_lea.sflag [#allocation16], %s490
          %s492 = sand.u32 %s128, 1
          %s493 = smul.addr %s492, 128
          %s494 = scalar_lea.vmem [#allocation15], %s493
          %s496 = ssub.s32 2048, 2048
          %497 = vsyncadd %s491, %s496
          %s498 = smul.addr %s36, 16
          %s499 = smul.addr %s498, 128
          %s500 = scalar_lea.hbm %s3, %s499
          %s501 = sshll.u32 %s494, 4
          %s502 = int_to_ptr.vmem [resolvable:$true] %s501
          %507 = dma.hbm_to_vmem [thread:$0]  %s500, 2048, %s502, %s491, 128, 128, 8
        $region48: #{tpu_custom_call.1} parent=43 // pred_fallthru
          _
        // Predicated region
        $region49: #{tpu_custom_call.1} parent=43 // pred_check
          %p508 = pneg %p164
        $region50: #{tpu_custom_call.1} parent=43 // pred_check_branch
          %510 = sbr.rel (%p508) target = $region52
        $region51: #{tpu_custom_call.1} parent=43 // pred_region
          %p511 = scmp.lt.s32.totalorder %s36, 2
          %s512 = scalar_select %p511, %s36, 2
          %s513 = scalar_lea.vmem %s4, %s512
        $region52: #{tpu_custom_call.1} parent=43 // pred_fallthru
          _
        // Predicated region
        $region53: #{tpu_custom_call.1} parent=43 // pred_check
          %p514 = pneg %p190
        $region54: #{tpu_custom_call.1} parent=43 // pred_check_branch
          %516 = sbr.rel (%p514) target = $region56
        $region55: #{tpu_custom_call.1} parent=43 // pred_region
          %s517 = sand.u32 %s29, 1
          %s518 = scalar_lea.sflag [#allocation16], %s517
          %s519 = sand.u32 %s180, 1
          %s520 = smul.addr %s519, 128
          %s521 = scalar_lea.vmem [#allocation17], %s520
          %s523 = ssub.s32 2048, 2048
          %524 = vsyncadd %s518, %s523
          %s525 = smul.addr %s36, 16
          %s526 = smul.addr %s525, 128
          %s527 = scalar_lea.hbm %s5, %s526
          %s528 = sshll.u32 %s521, 4
          %s529 = int_to_ptr.vmem [resolvable:$true] %s528
          %534 = dma.hbm_to_vmem [thread:$0]  %s527, 2048, %s529, %s518, 128, 128, 8
        $region56: #{tpu_custom_call.1} parent=43 // pred_fallthru
          _
        // Predicated region
        $region57: #{tpu_custom_call.1} parent=43 // pred_check
          %p535 = pneg %p216
        $region58: #{tpu_custom_call.1} parent=43 // pred_check_branch
          %537 = sbr.rel (%p535) target = $region60
        $region59: #{tpu_custom_call.1} parent=43 // pred_region
          %p538 = scmp.lt.s32.totalorder %s36, 2
          %s539 = scalar_select %p538, %s36, 2
          %s540 = scalar_lea.vmem %s6, %s539
        $region60: #{tpu_custom_call.1} parent=43 // pred_fallthru
          _
        // Predicated region
        $region61: #{tpu_custom_call.1} parent=43 // pred_check
          %p541 = pneg %p242
        $region62: #{tpu_custom_call.1} parent=43 // pred_check_branch
          %543 = sbr.rel (%p541) target = $region64
        $region63: #{tpu_custom_call.1} parent=43 // pred_region
          %p544 = scmp.lt.s32.totalorder %s36, 2
          %s545 = scalar_select %p544, %s36, 2
          %s546 = scalar_lea.vmem %s7, %s545
        $region64: #{tpu_custom_call.1} parent=43 // pred_fallthru
          _
        // Predicated region
        $region65: #{tpu_custom_call.1} parent=43 // pred_check
          %p547 = pneg %p268
        $region66: #{tpu_custom_call.1} parent=43 // pred_check_branch
          %549 = sbr.rel (%p547) target = $region68
        $region67: #{tpu_custom_call.1} parent=43 // pred_region
          %p550 = scmp.lt.s32.totalorder %s36, 2
          %s551 = scalar_select %p550, %s36, 2
          %s552 = scalar_lea.vmem %s8, %s551
        $region68: #{tpu_custom_call.1} parent=43 // pred_fallthru
          _
      $region44: #{tpu_custom_call.1} parent=5 // pred_fallthru
        _
      %p553 = scmp.le.s32.totalorder 1, %s29
      %p554 = scmp.lt.s32.totalorder %s29, 4
      %p555 = pnand %p553, %p554
      %p556 = pneg %p555
      // Predicated region
      $region69: #{tpu_custom_call.1} parent=5 // pred_check
        _
      $region70: #{tpu_custom_call.1} parent=5 // pred_check_branch
        %558 = sbr.rel (%p555) target = $region72
      $region71: #{tpu_custom_call.1} parent=5 // pred_region
        %s559 = ssub.s32 %s29, 1
        // Predicated region
        $region73: #{tpu_custom_call.1} parent=71 // pred_check
          %p560 = pneg %p76
        $region74: #{tpu_custom_call.1} parent=71 // pred_check_branch
          %562 = sbr.rel (%p560) target = $region76
        $region75: #{tpu_custom_call.1} parent=71 // pred_region
          %563 = dma.done [#allocation10], 64
        $region76: #{tpu_custom_call.1} parent=71 // pred_fallthru
          _
        // Predicated region
        $region77: #{tpu_custom_call.1} parent=71 // pred_check
          %p564 = pneg %p97
        $region78: #{tpu_custom_call.1} parent=71 // pred_check_branch
          %566 = sbr.rel (%p564) target = $region80
        $region79: #{tpu_custom_call.1} parent=71 // pred_region
          %567 = dma.done [#allocation13], 128
        $region80: #{tpu_custom_call.1} parent=71 // pred_fallthru
          _
        // Predicated region
        $region81: #{tpu_custom_call.1} parent=71 // pred_check
          %p568 = pneg %p118
        $region82: #{tpu_custom_call.1} parent=71 // pred_check_branch
          %570 = sbr.rel (%p568) target = $region84
        $region83: #{tpu_custom_call.1} parent=71 // pred_region
          %571 = dma.done [#allocation13], 64
        $region84: #{tpu_custom_call.1} parent=71 // pred_fallthru
          _
        %s572 = sand.u32 %s34, 1
        %s573 = scalar_lea.sflag [#allocation16], %s572
        %s574 = sand.u32 %s131, 1
        %s575 = smul.addr %s574, 128
        %s576 = scalar_lea.vmem [#allocation15], %s575
        // Predicated region
        $region85: #{tpu_custom_call.1} parent=71 // pred_check
          %p577 = pneg %p144
        $region86: #{tpu_custom_call.1} parent=71 // pred_check_branch
          %579 = sbr.rel (%p577) target = $region88
        $region87: #{tpu_custom_call.1} parent=71 // pred_region
          %580 = dma.done %s573, 2048
        $region88: #{tpu_custom_call.1} parent=71 // pred_fallthru
          _
        %s581 = sand.u32 %s34, 1
        %s582 = scalar_lea.sflag [#allocation16], %s581
        %s583 = sand.u32 %s183, 1
        %s584 = smul.addr %s583, 128
        %s585 = scalar_lea.vmem [#allocation17], %s584
        // Predicated region
        $region89: #{tpu_custom_call.1} parent=71 // pred_check
          %p586 = pneg %p196
        $region90: #{tpu_custom_call.1} parent=71 // pred_check_branch
          %588 = sbr.rel (%p586) target = $region92
        $region91: #{tpu_custom_call.1} parent=71 // pred_region
          %589 = dma.done %s582, 2048
        $region92: #{tpu_custom_call.1} parent=71 // pred_fallthru
          _
        // Predicated region
        $region93: #{tpu_custom_call.1} parent=71 // pred_check
          %p590 = pneg %p295
        $region94: #{tpu_custom_call.1} parent=71 // pred_check_branch
          %592 = sbr.rel (%p590) target = $region96
        $region95: #{tpu_custom_call.1} parent=71 // pred_region
          %593 = dma.done [#allocation19], 18432
        $region96: #{tpu_custom_call.1} parent=71 // pred_fallthru
          _
        // Predicated region
        $region97: #{tpu_custom_call.1} parent=71 // pred_check
          %p594 = pneg %p337
        $region98: #{tpu_custom_call.1} parent=71 // pred_check_branch
          %596 = sbr.rel (%p594) target = $region100
        $region99: #{tpu_custom_call.1} parent=71 // pred_region
          %597 = dma.done [#allocation19], 18432
        $region100: #{tpu_custom_call.1} parent=71 // pred_fallthru
          _
        %p598 = pneg %p76
        %p599 = pneg %p73
        %p600 = pneg %p97
        %p601 = pneg %p94
        %p602 = pneg %p118
        %p603 = pneg %p115
        %s604 = sand.u32 %s34, 1
        %s605 = scalar_lea.sflag [#allocation16], %s604
        %s606 = sand.u32 %s131, 1
        %s607 = smul.addr %s606, 128
        %s608 = scalar_lea.vmem [#allocation15], %s607
        %p609 = pneg %p144
        %p610 = pneg %p141
        %p611 = scmp.lt.s32.totalorder %s39, 2
        %s612 = scalar_select %p611, %s39, 2
        %s613 = scalar_lea.vmem %s4, %s612
        %p614 = pneg %p170
        %p615 = pneg %p167
        %s616 = sand.u32 %s34, 1
        %s617 = scalar_lea.sflag [#allocation16], %s616
        %s618 = sand.u32 %s183, 1
        %s619 = smul.addr %s618, 128
        %s620 = scalar_lea.vmem [#allocation17], %s619
        %p621 = pneg %p196
        %p622 = pneg %p193
        %p623 = scmp.lt.s32.totalorder %s39, 2
        %s624 = scalar_select %p623, %s39, 2
        %s625 = scalar_lea.vmem %s6, %s624
        %p626 = pneg %p222
        %p627 = pneg %p219
        %p628 = scmp.lt.s32.totalorder %s39, 2
        %s629 = scalar_select %p628, %s39, 2
        %s630 = scalar_lea.vmem %s7, %s629
        %p631 = pneg %p248
        %p632 = pneg %p245
        %p633 = scmp.lt.s32.totalorder %s39, 2
        %s634 = scalar_select %p633, %s39, 2
        %s635 = scalar_lea.vmem %s8, %s634
        %p636 = pneg %p274
        %p637 = pneg %p271
        %p638 = pneg %p295
        %p639 = pneg %p292
        %p640 = pneg %p316
        %p641 = pneg %p313
        %p642 = pneg %p337
        %p643 = pneg %p334
        %p644 = pneg %p358
        %p645 = pneg %p355
        %p646 = pneg %p379
        %p647 = pneg %p376
        %p648 = pneg %p400
        %p649 = pneg %p397
        %p650 = scmp.lt.s32.totalorder %s39, 2
        %s651 = scalar_select %p650, %s39, 2
        %s652 = scalar_lea.vmem %s4, %s651
        %p653 = scmp.lt.s32.totalorder %s39, 2
        %s654 = scalar_select %p653, %s39, 2
        %s655 = scalar_lea.vmem %s6, %s654
        %p656 = scmp.lt.s32.totalorder %s39, 2
        %s657 = scalar_select %p656, %s39, 2
        %s658 = scalar_lea.vmem %s7, %s657
        %p659 = scmp.lt.s32.totalorder %s39, 2
        %s660 = scalar_select %p659, %s39, 2
        %s661 = scalar_lea.vmem %s8, %s660
        %p662 = scmp.eq.s32.totalorder %s39, 0
        %p663 = scmp.eq.s32.totalorder %s40, 0
        %p664 = pnand %p662, %p663
        %p665 = pneg %p664
        %p666 = scmp.eq.s32.totalorder %s41, 0
        %p667 = pnand %p665, %p666
        %p668 = pneg %p667
        // Predicated region
        $region101: #{tpu_custom_call.1} parent=71 // pred_check
          _
        $region102: #{tpu_custom_call.1} parent=71 // pred_check_branch
          %670 = sbr.rel (%p667) target = $region104
        $region103: #{tpu_custom_call.1} parent=71 // pred_region
          %v671 = vld [vmem:[#allocation12] sm:$0xff]
          %672 = vst [vmem:[#allocation3] sm:$0xff] %v671
        $region104: #{tpu_custom_call.1} parent=71 // pred_fallthru
          _
        %p673 = pnand %p663, %p666
        %p674 = pneg %p673
        // Predicated region
        $region105: #{tpu_custom_call.1} parent=71 // pred_check
          _
        $region106: #{tpu_custom_call.1} parent=71 // pred_check_branch
          %676 = sbr.rel (%p673) target = $region108
        $region107: #{tpu_custom_call.1} parent=71 // pred_region
          %677 = vst [vmem:[#allocation5] sm:$0x1] 0.0
          %678 = vst [vmem:[#allocation6] sm:$0x1] 0.0
        $region108: #{tpu_custom_call.1} parent=71 // pred_fallthru
          _
        // Predicated region
        $region109: #{tpu_custom_call.1} parent=71 // pred_check
          %p679 = pneg %p666
        $region110: #{tpu_custom_call.1} parent=71 // pred_check_branch
          %681 = sbr.rel (%p679) target = $region112
        $region111: #{tpu_custom_call.1} parent=71 // pred_region
          %682 = vst [vmem:[#allocation2] sm:$0xff] 0.0
        $region112: #{tpu_custom_call.1} parent=71 // pred_fallthru
          _
        %s683 = smul.u32 %s41, 8
        %s684 = scalar_lea.vmem [#allocation3], %s683
        %v685 = vld [vmem:[%s684] sm:$0xff]
        %v686 = vld [vmem:[#allocation2] sm:$0xff]
        %v687 = vld [vmem:[#allocation9] sm:$0xf]
        %v688 = vunpack.c.l.bf16 %v687
        %vm689 = vcmask 64512
        %v691 = vsel %vm689, %v688, 0
        %693 = vmatprep.subr.mxu0 0.0
        %694 = vmatpush1.msra.mxu0 0.0
        %695 = vmatprep.subr.mxu0 0.0
        %696 = vmatpush1.msra.mxu0 0.0
        %697 = vmatprep.subr.mxu0 0.0
        %698 = vmatpush1.msra.mxu0 0.0
        %699 = vmatprep.subr.mxu0 0.0
        %700 = vmatpush1.msra.mxu0 0.0
        %701 = vmatprep.subr.mxu0 0.0
        %702 = vmatpush1.msra.mxu0 0.0
        %703 = vmatprep.subr.mxu0 0.0
        %704 = vmatpush1.msra.mxu0 0.0
        %705 = vmatprep.subr.mxu0 0.0
        %706 = vmatpush1.msra.mxu0 0.0
        %707 = vmatprep.subr.mxu0 0.0
        %708 = vmatpush1.msra.mxu0 0.0
        %709 = vmatprep.subr.mxu0 0.0
        %710 = vmatpush1.msra.mxu0 0.0
        %711 = vmatprep.subr.mxu0 0.0
        %712 = vmatpush1.msra.mxu0 0.0
        %713 = vmatprep.subr.mxu0 0.0
        %714 = vmatpush1.msra.mxu0 0.0
        %715 = vmatprep.subr.mxu0 0.0
        %716 = vmatpush1.msra.mxu0 0.0
        %717 = vmatprep.subr.mxu0 0.0
        %718 = vmatpush1.msra.mxu0 0.0
        %719 = vmatprep.subr.mxu0 0.0
        %720 = vmatpush1.msra.mxu0 0.0
        %721 = vmatprep.subr.mxu0 0.0
        %722 = vmatpush1.msra.mxu0 0.0
        %723 = vmatprep.subr.mxu0 0.0
        %724 = vmatpush1.msra.mxu0 %v685
        %725 = vmatprep.subr.mxu0 0.0
        %726 = vmatpush2.msra.mxu0 0.0
        %727 = vmatprep.subr.mxu0 0.0
        %728 = vmatpush2.msra.mxu0 0.0
        %729 = vmatprep.subr.mxu0 0.0
        %730 = vmatpush2.msra.mxu0 0.0
        %731 = vmatprep.subr.mxu0 0.0
        %732 = vmatpush2.msra.mxu0 0.0
        %733 = vmatprep.subr.mxu0 0.0
        %734 = vmatpush2.msra.mxu0 0.0
        %735 = vmatprep.subr.mxu0 0.0
        %736 = vmatpush2.msra.mxu0 0.0
        %737 = vmatprep.subr.mxu0 0.0
        %738 = vmatpush2.msra.mxu0 0.0
        %739 = vmatprep.subr.mxu0 0.0
        %740 = vmatpush2.msra.mxu0 0.0
        %741 = vmatprep.subr.mxu0 0.0
        %742 = vmatpush2.msra.mxu0 0.0
        %743 = vmatprep.subr.mxu0 0.0
        %744 = vmatpush2.msra.mxu0 0.0
        %745 = vmatprep.subr.mxu0 0.0
        %746 = vmatpush2.msra.mxu0 0.0
        %747 = vmatprep.subr.mxu0 0.0
        %748 = vmatpush2.msra.mxu0 0.0
        %749 = vmatprep.subr.mxu0 0.0
        %750 = vmatpush2.msra.mxu0 0.0
        %751 = vmatprep.subr.mxu0 0.0
        %752 = vmatpush2.msra.mxu0 0.0
        %753 = vmatprep.subr.mxu0 0.0
        %754 = vmatpush2.msra.mxu0 0.0
        %755 = vmatprep.subr.mxu0 0.0
        %756 = vmatpush2.msra.mxu0 0.0
        %757 = vmatprep.mubr.f32.mxu0 0.0
        %758 = vmatmul.mubr.f32.gmra.mxu0 %v691
        %v759 = vpop.f32.mrf.mxu0
        %v760 = vadd.f32 0.0, %v759
        %v761 = vpop.f32.mrf.mxu0
        %762 = vdwg.mxu0
        %v763 = vadd.f32 %v686, %v760
        %764 = vst [vmem:[#allocation2] sm:$0xff] %v763
        // Predicated region
        $region113: #{tpu_custom_call.1} parent=71 // pred_check
          %p765 = pneg %p666
        $region114: #{tpu_custom_call.1} parent=71 // pred_check_branch
          %767 = sbr.rel (%p765) target = $region116
        $region115: #{tpu_custom_call.1} parent=71 // pred_region
          %s768 = smul.u32 %s40, 8
          %v769 = vld [vmem:[#allocation2] sm:$0xff]
          %s770 = scalar_lea.vmem [#allocation3], %s768
          %v771 = vld [vmem:[%s770] sm:$0xff]
          %v772 = vadd.f32 %v769, %v771
          %v773 = vld [vmem:[%s576] sm:$0xff]
          %v774 = vld [vmem:[%s576 + $0x8] sm:$0xff]
          %v775 = vld [vmem:[%s576 + $0x10] sm:$0xff]
          %v776 = vld [vmem:[%s576 + $0x18] sm:$0xff]
          %v777 = vld [vmem:[%s576 + $0x20] sm:$0xff]
          %v778 = vld [vmem:[%s576 + $0x28] sm:$0xff]
          %v779 = vld [vmem:[%s576 + $0x30] sm:$0xff]
          %v780 = vld [vmem:[%s576 + $0x38] sm:$0xff]
          %v781 = vld [vmem:[%s576 + $0x40] sm:$0xff]
          %v782 = vld [vmem:[%s576 + $0x48] sm:$0xff]
          %v783 = vld [vmem:[%s576 + $0x50] sm:$0xff]
          %v784 = vld [vmem:[%s576 + $0x58] sm:$0xff]
          %v785 = vld [vmem:[%s576 + $0x60] sm:$0xff]
          %v786 = vld [vmem:[%s576 + $0x68] sm:$0xff]
          %v787 = vld [vmem:[%s576 + $0x70] sm:$0xff]
          %v788 = vld [vmem:[%s576 + $0x78] sm:$0xff]
          %v789 = vld [vmem:[%s652] sm:$0x1]
          %v791 = vlaneseq
          %v792 = vshrl.u32 %v791, 7
          %v793 = vsub.s32 0, %v792
          %v794 = vrot.slane %v789, %v793
          %796 = vmatprep.subr.mxu0 0.0
          %797 = vmatpush1.msra.mxu0 %v788
          %798 = vmatprep.subr.mxu0 0.0
          %799 = vmatpush1.msra.mxu0 %v787
          %800 = vmatprep.subr.mxu0 0.0
          %801 = vmatpush1.msra.mxu0 %v786
          %802 = vmatprep.subr.mxu0 0.0
          %803 = vmatpush1.msra.mxu0 %v785
          %804 = vmatprep.subr.mxu0 0.0
          %805 = vmatpush1.msra.mxu0 %v784
          %806 = vmatprep.subr.mxu0 0.0
          %807 = vmatpush1.msra.mxu0 %v783
          %808 = vmatprep.subr.mxu0 0.0
          %809 = vmatpush1.msra.mxu0 %v782
          %810 = vmatprep.subr.mxu0 0.0
          %811 = vmatpush1.msra.mxu0 %v781
          %812 = vmatprep.subr.mxu0 0.0
          %813 = vmatpush1.msra.mxu0 %v780
          %814 = vmatprep.subr.mxu0 0.0
          %815 = vmatpush1.msra.mxu0 %v779
          %816 = vmatprep.subr.mxu0 0.0
          %817 = vmatpush1.msra.mxu0 %v778
          %818 = vmatprep.subr.mxu0 0.0
          %819 = vmatpush1.msra.mxu0 %v777
          %820 = vmatprep.subr.mxu0 0.0
          %821 = vmatpush1.msra.mxu0 %v776
          %822 = vmatprep.subr.mxu0 0.0
          %823 = vmatpush1.msra.mxu0 %v775
          %824 = vmatprep.subr.mxu0 0.0
          %825 = vmatpush1.msra.mxu0 %v774
          %826 = vmatprep.subr.mxu0 0.0
          %827 = vmatpush1.msra.mxu0 %v773
          %828 = vmatprep.subr.mxu0 0.0
          %829 = vmatpush2.msra.mxu0 0.0
          %830 = vmatprep.subr.mxu0 0.0
          %831 = vmatpush2.msra.mxu0 0.0
          %832 = vmatprep.subr.mxu0 0.0
          %833 = vmatpush2.msra.mxu0 0.0
          %834 = vmatprep.subr.mxu0 0.0
          %835 = vmatpush2.msra.mxu0 0.0
          %836 = vmatprep.subr.mxu0 0.0
          %837 = vmatpush2.msra.mxu0 0.0
          %838 = vmatprep.subr.mxu0 0.0
          %839 = vmatpush2.msra.mxu0 0.0
          %840 = vmatprep.subr.mxu0 0.0
          %841 = vmatpush2.msra.mxu0 0.0
          %842 = vmatprep.subr.mxu0 0.0
          %843 = vmatpush2.msra.mxu0 0.0
          %844 = vmatprep.subr.mxu0 0.0
          %845 = vmatpush2.msra.mxu0 0.0
          %846 = vmatprep.subr.mxu0 0.0
          %847 = vmatpush2.msra.mxu0 0.0
          %848 = vmatprep.subr.mxu0 0.0
          %849 = vmatpush2.msra.mxu0 0.0
          %850 = vmatprep.subr.mxu0 0.0
          %851 = vmatpush2.msra.mxu0 0.0
          %852 = vmatprep.subr.mxu0 0.0
          %853 = vmatpush2.msra.mxu0 0.0
          %854 = vmatprep.subr.mxu0 0.0
          %855 = vmatpush2.msra.mxu0 0.0
          %856 = vmatprep.subr.mxu0 0.0
          %857 = vmatpush2.msra.mxu0 0.0
          %858 = vmatprep.subr.mxu0 0.0
          %859 = vmatpush2.msra.mxu0 0.0
          %860 = vmatprep.mubr.f32.mxu0 0.0
          %861 = vmatmul.mubr.f32.gmra.mxu0 %v772
          %v862 = vpop.f32.mrf.mxu0
          %v863 = vadd.f32 %v794, %v862
          %v864 = vpop.f32.mrf.mxu0
          %865 = vdwg.mxu0
          %v866 = vmax.f32 %v863, 0.0
          %v867 = vld [vmem:[%s585] sm:$0xff]
          %v868 = vld [vmem:[%s585 + $0x8] sm:$0xff]
          %v869 = vld [vmem:[%s585 + $0x10] sm:$0xff]
          %v870 = vld [vmem:[%s585 + $0x18] sm:$0xff]
          %v871 = vld [vmem:[%s585 + $0x20] sm:$0xff]
          %v872 = vld [vmem:[%s585 + $0x28] sm:$0xff]
          %v873 = vld [vmem:[%s585 + $0x30] sm:$0xff]
          %v874 = vld [vmem:[%s585 + $0x38] sm:$0xff]
          %v875 = vld [vmem:[%s585 + $0x40] sm:$0xff]
          %v876 = vld [vmem:[%s585 + $0x48] sm:$0xff]
          %v877 = vld [vmem:[%s585 + $0x50] sm:$0xff]
          %v878 = vld [vmem:[%s585 + $0x58] sm:$0xff]
          %v879 = vld [vmem:[%s585 + $0x60] sm:$0xff]
          %v880 = vld [vmem:[%s585 + $0x68] sm:$0xff]
          %v881 = vld [vmem:[%s585 + $0x70] sm:$0xff]
          %v882 = vld [vmem:[%s585 + $0x78] sm:$0xff]
          %v883 = vld [vmem:[%s655] sm:$0x1]
          %v885 = vlaneseq
          %v886 = vshrl.u32 %v885, 7
          %v887 = vsub.s32 0, %v886
          %v888 = vrot.slane %v883, %v887
          %890 = vmatprep.subr.mxu0 0.0
          %891 = vmatpush1.msra.mxu0 %v882
          %892 = vmatprep.subr.mxu0 0.0
          %893 = vmatpush1.msra.mxu0 %v881
          %894 = vmatprep.subr.mxu0 0.0
          %895 = vmatpush1.msra.mxu0 %v880
          %896 = vmatprep.subr.mxu0 0.0
          %897 = vmatpush1.msra.mxu0 %v879
          %898 = vmatprep.subr.mxu0 0.0
          %899 = vmatpush1.msra.mxu0 %v878
          %900 = vmatprep.subr.mxu0 0.0
          %901 = vmatpush1.msra.mxu0 %v877
          %902 = vmatprep.subr.mxu0 0.0
          %903 = vmatpush1.msra.mxu0 %v876
          %904 = vmatprep.subr.mxu0 0.0
          %905 = vmatpush1.msra.mxu0 %v875
          %906 = vmatprep.subr.mxu0 0.0
          %907 = vmatpush1.msra.mxu0 %v874
          %908 = vmatprep.subr.mxu0 0.0
          %909 = vmatpush1.msra.mxu0 %v873
          %910 = vmatprep.subr.mxu0 0.0
          %911 = vmatpush1.msra.mxu0 %v872
          %912 = vmatprep.subr.mxu0 0.0
          %913 = vmatpush1.msra.mxu0 %v871
          %914 = vmatprep.subr.mxu0 0.0
          %915 = vmatpush1.msra.mxu0 %v870
          %916 = vmatprep.subr.mxu0 0.0
          %917 = vmatpush1.msra.mxu0 %v869
          %918 = vmatprep.subr.mxu0 0.0
          %919 = vmatpush1.msra.mxu0 %v868
          %920 = vmatprep.subr.mxu0 0.0
          %921 = vmatpush1.msra.mxu0 %v867
          %922 = vmatprep.subr.mxu0 0.0
          %923 = vmatpush2.msra.mxu0 0.0
          %924 = vmatprep.subr.mxu0 0.0
          %925 = vmatpush2.msra.mxu0 0.0
          %926 = vmatprep.subr.mxu0 0.0
          %927 = vmatpush2.msra.mxu0 0.0
          %928 = vmatprep.subr.mxu0 0.0
          %929 = vmatpush2.msra.mxu0 0.0
          %930 = vmatprep.subr.mxu0 0.0
          %931 = vmatpush2.msra.mxu0 0.0
          %932 = vmatprep.subr.mxu0 0.0
          %933 = vmatpush2.msra.mxu0 0.0
          %934 = vmatprep.subr.mxu0 0.0
          %935 = vmatpush2.msra.mxu0 0.0
          %936 = vmatprep.subr.mxu0 0.0
          %937 = vmatpush2.msra.mxu0 0.0
          %938 = vmatprep.subr.mxu0 0.0
          %939 = vmatpush2.msra.mxu0 0.0
          %940 = vmatprep.subr.mxu0 0.0
          %941 = vmatpush2.msra.mxu0 0.0
          %942 = vmatprep.subr.mxu0 0.0
          %943 = vmatpush2.msra.mxu0 0.0
          %944 = vmatprep.subr.mxu0 0.0
          %945 = vmatpush2.msra.mxu0 0.0
          %946 = vmatprep.subr.mxu0 0.0
          %947 = vmatpush2.msra.mxu0 0.0
          %948 = vmatprep.subr.mxu0 0.0
          %949 = vmatpush2.msra.mxu0 0.0
          %950 = vmatprep.subr.mxu0 0.0
          %951 = vmatpush2.msra.mxu0 0.0
          %952 = vmatprep.subr.mxu0 0.0
          %953 = vmatpush2.msra.mxu0 0.0
          %954 = vmatprep.mubr.f32.mxu0 0.0
          %955 = vmatmul.mubr.f32.gmra.mxu0 %v866
          %v956 = vpop.f32.mrf.mxu0
          %v957 = vadd.f32 %v888, %v956
          %v958 = vpop.f32.mrf.mxu0
          %959 = vdwg.mxu0
          %v960 = vmax.f32 %v957, 0.0
          %v961 = vlaneseq
          %v962 = vshrl.u32 %v961, 7
          %v963 = vstv %s768
          %v964 = vadd.s32 %v963, %v962
          %vm965 = vcmp.lt.s32.totalorder %v964, 8
          %v966 = vsel %vm965, 1, 0
          %v967 = vcvt.s32.f32 %v966
          %v968 = vmul.f32 %v960, %v967
          %s969 = scalar_lea.vmem [#allocation4], %s768
          %970 = vst [vmem:[%s969] sm:$0xff] %v968
          %v971 = vld [vmem:[#allocation5] sm:$0x1]
          %v972 = vrot.slane %v968, 4
          %v973 = vadd.f32 %v968, %v972
          %v974 = vrot.slane %v973, 2
          %v975 = vadd.f32 %v973, %v974
          %v976 = vrot.slane %v975, 1
          %v977 = vadd.f32 %v975, %v976
          %v978 = vadd.f32 %v971, %v977
          %979 = vst [vmem:[#allocation5] sm:$0x1] %v978
          %v980 = vld [vmem:[#allocation6] sm:$0x1]
          %v981 = vmul.f32 %v968, %v968
          %v982 = vrot.slane %v981, 4
          %v983 = vadd.f32 %v981, %v982
          %v984 = vrot.slane %v983, 2
          %v985 = vadd.f32 %v983, %v984
          %v986 = vrot.slane %v985, 1
          %v987 = vadd.f32 %v985, %v986
          %v988 = vadd.f32 %v980, %v987
          %989 = vst [vmem:[#allocation6] sm:$0x1] %v988
        $region116: #{tpu_custom_call.1} parent=71 // pred_fallthru
          _
        // Predicated region
        $region117: #{tpu_custom_call.1} parent=71 // pred_check
          _
        $region118: #{tpu_custom_call.1} parent=71 // pred_check_branch
          %991 = sbr.rel (%p673) target = $region120
        $region119: #{tpu_custom_call.1} parent=71 // pred_region
          %v992 = vld [vmem:[#allocation5] sm:$0x1]
          %v993 = vmul.f32 %v992, 0.125
          %v994 = vld [vmem:[#allocation6] sm:$0x1]
          %v995 = vmul.f32 %v994, 0.125
          %v996 = vmul.f32 %v993, %v993
          %v997 = vsub.f32 %v995, %v996
          %v998 = vmax.f32 %v997, 0.0
          %v999 = vadd.f32 %v998, 1e-05
          %v1000 = vrsqrt.pop %v999
          %v1001 = vld [vmem:[%s658] sm:$0x1]
          %v1002 = vmul.f32 %v1001, %v1000
          %v1003 = vld [vmem:[%s661] sm:$0x1]
          %v1004 = vmul.f32 %v993, %v1002
          %v1005 = vsub.f32 %v1003, %v1004
          %1006 = vst [vmem:[#allocation7] sm:$0xff] 0.0
          %v1007 = vld [vmem:[#allocation4] sm:$0xff]
          %v1009 = vlaneseq
          %v1010 = vshrl.u32 %v1009, 7
          %v1011 = vsub.s32 0, %v1010
          %v1012 = vrot.slane %v1002, %v1011
          %v1014 = vmul.f32 %v1007, %v1012
          %v1016 = vlaneseq
          %v1017 = vshrl.u32 %v1016, 7
          %v1018 = vsub.s32 0, %v1017
          %v1019 = vrot.slane %v1005, %v1018
          %v1021 = vadd.f32 %v1014, %v1019
          %v1022 = vlaneseq
          %v1023 = vshrl.u32 %v1022, 7
          %vm1024 = vcmp.lt.s32.totalorder %v1023, 8
          %v1025 = vsel %vm1024, 1, 0
          %v1026 = vcvt.s32.f32 %v1025
          %v1027 = vmul.f32 %v1021, %v1026
          %1028 = vst [vmem:[#allocation3] sm:$0xff] %v1027
          %v1029 = vld [vmem:[#allocation14] sm:$0xf]
          %v1030 = vunpack.c.l.bf16 %v1029
          %v1031 = vld [vmem:[#allocation7] sm:$0xff]
          %1032 = vxpose.xlu0.b32.start [1/16] %v1030, 128
          %1033 = vxpose.xlu0.b32.cont [2/16] 0.0, 128
          %1034 = vxpose.xlu0.b32.cont [3/16] 0.0, 128
          %1035 = vxpose.xlu0.b32.cont [4/16] 0.0, 128
          %1036 = vxpose.xlu0.b32.cont [5/16] 0.0, 128
          %1037 = vxpose.xlu0.b32.cont [6/16] 0.0, 128
          %1038 = vxpose.xlu0.b32.cont [7/16] 0.0, 128
          %1039 = vxpose.xlu0.b32.cont [8/16] 0.0, 128
          %1040 = vxpose.xlu0.b32.cont [9/16] 0.0, 128
          %1041 = vxpose.xlu0.b32.cont [10/16] 0.0, 128
          %1042 = vxpose.xlu0.b32.cont [11/16] 0.0, 128
          %1043 = vxpose.xlu0.b32.cont [12/16] 0.0, 128
          %1044 = vxpose.xlu0.b32.cont [13/16] 0.0, 128
          %1045 = vxpose.xlu0.b32.cont [14/16] 0.0, 128
          %1046 = vxpose.xlu0.b32.cont [15/16] 0.0, 128
          %1047 = vxpose.xlu0.b32.end [16/16] 0.0, 128
          %v1048 = vpop.trf.xlu0
          %v1049 = vpop.trf.xlu0
          %v1050 = vpop.trf.xlu0
          %v1051 = vpop.trf.xlu0
          %v1052 = vpop.trf.xlu0
          %v1053 = vpop.trf.xlu0
          %v1054 = vpop.trf.xlu0
          %v1055 = vpop.trf.xlu0
          %v1056 = vpop.trf.xlu0
          %v1057 = vpop.trf.xlu0
          %v1058 = vpop.trf.xlu0
          %v1059 = vpop.trf.xlu0
          %v1060 = vpop.trf.xlu0
          %v1061 = vpop.trf.xlu0
          %v1062 = vpop.trf.xlu0
          %v1063 = vpop.trf.xlu0
          %v1065 = vsel %vm689, %v1048, 0
          %1067 = vmatprep.subr.mxu0 0.0
          %1068 = vmatpush1.msra.mxu0 0.0
          %1069 = vmatprep.subr.mxu0 0.0
          %1070 = vmatpush1.msra.mxu0 0.0
          %1071 = vmatprep.subr.mxu0 0.0
          %1072 = vmatpush1.msra.mxu0 0.0
          %1073 = vmatprep.subr.mxu0 0.0
          %1074 = vmatpush1.msra.mxu0 0.0
          %1075 = vmatprep.subr.mxu0 0.0
          %1076 = vmatpush1.msra.mxu0 0.0
          %1077 = vmatprep.subr.mxu0 0.0
          %1078 = vmatpush1.msra.mxu0 0.0
          %1079 = vmatprep.subr.mxu0 0.0
          %1080 = vmatpush1.msra.mxu0 0.0
          %1081 = vmatprep.subr.mxu0 0.0
          %1082 = vmatpush1.msra.mxu0 0.0
          %1083 = vmatprep.subr.mxu0 0.0
          %1084 = vmatpush1.msra.mxu0 0.0
          %1085 = vmatprep.subr.mxu0 0.0
          %1086 = vmatpush1.msra.mxu0 0.0
          %1087 = vmatprep.subr.mxu0 0.0
          %1088 = vmatpush1.msra.mxu0 0.0
          %1089 = vmatprep.subr.mxu0 0.0
          %1090 = vmatpush1.msra.mxu0 0.0
          %1091 = vmatprep.subr.mxu0 0.0
          %1092 = vmatpush1.msra.mxu0 0.0
          %1093 = vmatprep.subr.mxu0 0.0
          %1094 = vmatpush1.msra.mxu0 0.0
          %1095 = vmatprep.subr.mxu0 0.0
          %1096 = vmatpush1.msra.mxu0 0.0
          %1097 = vmatprep.subr.mxu0 0.0
          %1098 = vmatpush1.msra.mxu0 %v1027
          %1099 = vmatprep.subr.mxu0 0.0
          %1100 = vmatpush2.msra.mxu0 0.0
          %1101 = vmatprep.subr.mxu0 0.0
          %1102 = vmatpush2.msra.mxu0 0.0
          %1103 = vmatprep.subr.mxu0 0.0
          %1104 = vmatpush2.msra.mxu0 0.0
          %1105 = vmatprep.subr.mxu0 0.0
          %1106 = vmatpush2.msra.mxu0 0.0
          %1107 = vmatprep.subr.mxu0 0.0
          %1108 = vmatpush2.msra.mxu0 0.0
          %1109 = vmatprep.subr.mxu0 0.0
          %1110 = vmatpush2.msra.mxu0 0.0
          %1111 = vmatprep.subr.mxu0 0.0
          %1112 = vmatpush2.msra.mxu0 0.0
          %1113 = vmatprep.subr.mxu0 0.0
          %1114 = vmatpush2.msra.mxu0 0.0
          %1115 = vmatprep.subr.mxu0 0.0
          %1116 = vmatpush2.msra.mxu0 0.0
          %1117 = vmatprep.subr.mxu0 0.0
          %1118 = vmatpush2.msra.mxu0 0.0
          %1119 = vmatprep.subr.mxu0 0.0
          %1120 = vmatpush2.msra.mxu0 0.0
          %1121 = vmatprep.subr.mxu0 0.0
          %1122 = vmatpush2.msra.mxu0 0.0
          %1123 = vmatprep.subr.mxu0 0.0
          %1124 = vmatpush2.msra.mxu0 0.0
          %1125 = vmatprep.subr.mxu0 0.0
          %1126 = vmatpush2.msra.mxu0 0.0
          %1127 = vmatprep.subr.mxu0 0.0
          %1128 = vmatpush2.msra.mxu0 0.0
          %1129 = vmatprep.subr.mxu0 0.0
          %1130 = vmatpush2.msra.mxu0 0.0
          %1131 = vmatprep.mubr.f32.mxu0 0.0
          %1132 = vmatmul.mubr.f32.gmra.mxu0 %v1065
          %v1133 = vpop.f32.mrf.mxu0
          %v1134 = vadd.f32 0.0, %v1133
          %v1135 = vpop.f32.mrf.mxu0
          %1136 = vdwg.mxu0
          %v1137 = vadd.f32 %v1031, %v1134
          %1138 = vst [vmem:[#allocation7] sm:$0xff] %v1137
          %v1139 = vld [vmem:[#allocation7] sm:$0xff]
          %s1140 = smul.u32 %s39, 8
          %s1141 = scalar_lea.vmem [#allocation8], %s1140
          %1142 = vst [vmem:[%s1141] sm:$0xff] %v1139
        $region120: #{tpu_custom_call.1} parent=71 // pred_fallthru
          _
        %p1143 = scmp.eq.s32.totalorder %s39, 2
        %p1144 = pnand %p1143, %p663
        %p1145 = pneg %p1144
        %p1146 = pnand %p1145, %p666
        %p1147 = pneg %p1146
        // Predicated region
        $region121: #{tpu_custom_call.1} parent=71 // pred_check
          _
        $region122: #{tpu_custom_call.1} parent=71 // pred_check_branch
          %1149 = sbr.rel (%p1146) target = $region124
        $region123: #{tpu_custom_call.1} parent=71 // pred_region
          %v1150 = vld [vmem:[#allocation8] sm:$0xff]
          %s1151 = scalar_lea.vmem [#allocation8], 8
          %v1152 = vld [vmem:[%s1151] sm:$0xff]
          %s1153 = scalar_lea.vmem [#allocation8], 16
          %v1154 = vld [vmem:[%s1153] sm:$0xff]
          %v1155 = vld [vmem:[#allocation18] sm:$0xff]
          %v1156 = vld [vmem:[#allocation18 + $0x8] sm:$0xff]
          %v1157 = vld [vmem:[#allocation18 + $0x10] sm:$0xff]
          %v1158 = vld [vmem:[#allocation18 + $0x18] sm:$0xff]
          %v1159 = vld [vmem:[#allocation18 + $0x20] sm:$0xff]
          %v1160 = vld [vmem:[#allocation18 + $0x28] sm:$0xff]
          %v1161 = vld [vmem:[#allocation18 + $0x30] sm:$0xff]
          %v1162 = vld [vmem:[#allocation18 + $0x38] sm:$0xff]
          %v1163 = vld [vmem:[#allocation18 + $0x40] sm:$0xff]
          %v1164 = vld [vmem:[#allocation18 + $0x48] sm:$0xff]
          %v1165 = vld [vmem:[#allocation18 + $0x50] sm:$0xff]
          %v1166 = vld [vmem:[#allocation18 + $0x58] sm:$0xff]
          %v1167 = vld [vmem:[#allocation18 + $0x60] sm:$0xff]
          %v1168 = vld [vmem:[#allocation18 + $0x68] sm:$0xff]
          %v1169 = vld [vmem:[#allocation18 + $0x70] sm:$0xff]
          %v1170 = vld [vmem:[#allocation18 + $0x78] sm:$0xff]
          %v1171 = vld [vmem:[#allocation18 + $0x80] sm:$0xff]
          %v1172 = vld [vmem:[#allocation18 + $0x88] sm:$0xff]
          %v1173 = vld [vmem:[#allocation18 + $0x90] sm:$0xff]
          %v1174 = vld [vmem:[#allocation18 + $0x98] sm:$0xff]
          %v1175 = vld [vmem:[#allocation18 + $0xa0] sm:$0xff]
          %v1176 = vld [vmem:[#allocation18 + $0xa8] sm:$0xff]
          %v1177 = vld [vmem:[#allocation18 + $0xb0] sm:$0xff]
          %v1178 = vld [vmem:[#allocation18 + $0xb8] sm:$0xff]
          %v1179 = vld [vmem:[#allocation18 + $0xc0] sm:$0xff]
          %v1180 = vld [vmem:[#allocation18 + $0xc8] sm:$0xff]
          %v1181 = vld [vmem:[#allocation18 + $0xd0] sm:$0xff]
          %v1182 = vld [vmem:[#allocation18 + $0xd8] sm:$0xff]
          %v1183 = vld [vmem:[#allocation18 + $0xe0] sm:$0xff]
          %v1184 = vld [vmem:[#allocation18 + $0xe8] sm:$0xff]
          %v1185 = vld [vmem:[#allocation18 + $0xf0] sm:$0xff]
          %v1186 = vld [vmem:[#allocation18 + $0xf8] sm:$0xff]
          %v1187 = vld [vmem:[#allocation18 + $0x100] sm:$0xff]
          %v1188 = vld [vmem:[#allocation18 + $0x108] sm:$0xff]
          %v1189 = vld [vmem:[#allocation18 + $0x110] sm:$0xff]
          %v1190 = vld [vmem:[#allocation18 + $0x118] sm:$0xff]
          %v1191 = vld [vmem:[#allocation18 + $0x120] sm:$0xff]
          %v1192 = vld [vmem:[#allocation18 + $0x128] sm:$0xff]
          %v1193 = vld [vmem:[#allocation18 + $0x130] sm:$0xff]
          %v1194 = vld [vmem:[#allocation18 + $0x138] sm:$0xff]
          %v1195 = vld [vmem:[#allocation18 + $0x140] sm:$0xff]
          %v1196 = vld [vmem:[#allocation18 + $0x148] sm:$0xff]
          %v1197 = vld [vmem:[#allocation18 + $0x150] sm:$0xff]
          %v1198 = vld [vmem:[#allocation18 + $0x158] sm:$0xff]
          %v1199 = vld [vmem:[#allocation18 + $0x160] sm:$0xff]
          %v1200 = vld [vmem:[#allocation18 + $0x168] sm:$0xff]
          %v1201 = vld [vmem:[#allocation18 + $0x170] sm:$0xff]
          %v1202 = vld [vmem:[#allocation18 + $0x178] sm:$0xff]
          %v1203 = vld [vmem:[#allocation18 + $0x180] sm:$0xff]
          %v1204 = vld [vmem:[#allocation18 + $0x188] sm:$0xff]
          %v1205 = vld [vmem:[#allocation18 + $0x190] sm:$0xff]
          %v1206 = vld [vmem:[#allocation18 + $0x198] sm:$0xff]
          %v1207 = vld [vmem:[#allocation18 + $0x1a0] sm:$0xff]
          %v1208 = vld [vmem:[#allocation18 + $0x1a8] sm:$0xff]
          %v1209 = vld [vmem:[#allocation18 + $0x1b0] sm:$0xff]
          %v1210 = vld [vmem:[#allocation18 + $0x1b8] sm:$0xff]
          %v1211 = vld [vmem:[#allocation18 + $0x1c0] sm:$0xff]
          %v1212 = vld [vmem:[#allocation18 + $0x1c8] sm:$0xff]
          %v1213 = vld [vmem:[#allocation18 + $0x1d0] sm:$0xff]
          %v1214 = vld [vmem:[#allocation18 + $0x1d8] sm:$0xff]
          %v1215 = vld [vmem:[#allocation18 + $0x1e0] sm:$0xff]
          %v1216 = vld [vmem:[#allocation18 + $0x1e8] sm:$0xff]
          %v1217 = vld [vmem:[#allocation18 + $0x1f0] sm:$0xff]
          %v1218 = vld [vmem:[#allocation18 + $0x1f8] sm:$0xff]
          %v1219 = vld [vmem:[#allocation18 + $0x200] sm:$0xff]
          %v1220 = vld [vmem:[#allocation18 + $0x208] sm:$0xff]
          %v1221 = vld [vmem:[#allocation18 + $0x210] sm:$0xff]
          %v1222 = vld [vmem:[#allocation18 + $0x218] sm:$0xff]
          %v1223 = vld [vmem:[#allocation18 + $0x220] sm:$0xff]
          %v1224 = vld [vmem:[#allocation18 + $0x228] sm:$0xff]
          %v1225 = vld [vmem:[#allocation18 + $0x230] sm:$0xff]
          %v1226 = vld [vmem:[#allocation18 + $0x238] sm:$0xff]
          %v1227 = vld [vmem:[#allocation18 + $0x240] sm:$0xff]
          %v1228 = vld [vmem:[#allocation18 + $0x248] sm:$0xff]
          %v1229 = vld [vmem:[#allocation18 + $0x250] sm:$0xff]
          %v1230 = vld [vmem:[#allocation18 + $0x258] sm:$0xff]
          %v1231 = vld [vmem:[#allocation18 + $0x260] sm:$0xff]
          %v1232 = vld [vmem:[#allocation18 + $0x268] sm:$0xff]
          %v1233 = vld [vmem:[#allocation18 + $0x270] sm:$0xff]
          %v1234 = vld [vmem:[#allocation18 + $0x278] sm:$0xff]
          %v1235 = vld [vmem:[#allocation18 + $0x280] sm:$0xff]
          %v1236 = vld [vmem:[#allocation18 + $0x288] sm:$0xff]
          %v1237 = vld [vmem:[#allocation18 + $0x290] sm:$0xff]
          %v1238 = vld [vmem:[#allocation18 + $0x298] sm:$0xff]
          %v1239 = vld [vmem:[#allocation18 + $0x2a0] sm:$0xff]
          %v1240 = vld [vmem:[#allocation18 + $0x2a8] sm:$0xff]
          %v1241 = vld [vmem:[#allocation18 + $0x2b0] sm:$0xff]
          %v1242 = vld [vmem:[#allocation18 + $0x2b8] sm:$0xff]
          %v1243 = vld [vmem:[#allocation18 + $0x2c0] sm:$0xff]
          %v1244 = vld [vmem:[#allocation18 + $0x2c8] sm:$0xff]
          %v1245 = vld [vmem:[#allocation18 + $0x2d0] sm:$0xff]
          %v1246 = vld [vmem:[#allocation18 + $0x2d8] sm:$0xff]
          %v1247 = vld [vmem:[#allocation18 + $0x2e0] sm:$0xff]
          %v1248 = vld [vmem:[#allocation18 + $0x2e8] sm:$0xff]
          %v1249 = vld [vmem:[#allocation18 + $0x2f0] sm:$0xff]
          %v1250 = vld [vmem:[#allocation18 + $0x2f8] sm:$0xff]
          %v1251 = vld [vmem:[#allocation18 + $0x300] sm:$0xff]
          %v1252 = vld [vmem:[#allocation18 + $0x308] sm:$0xff]
          %v1253 = vld [vmem:[#allocation18 + $0x310] sm:$0xff]
          %v1254 = vld [vmem:[#allocation18 + $0x318] sm:$0xff]
          %v1255 = vld [vmem:[#allocation18 + $0x320] sm:$0xff]
          %v1256 = vld [vmem:[#allocation18 + $0x328] sm:$0xff]
          %v1257 = vld [vmem:[#allocation18 + $0x330] sm:$0xff]
          %v1258 = vld [vmem:[#allocation18 + $0x338] sm:$0xff]
          %v1259 = vld [vmem:[#allocation18 + $0x340] sm:$0xff]
          %v1260 = vld [vmem:[#allocation18 + $0x348] sm:$0xff]
          %v1261 = vld [vmem:[#allocation18 + $0x350] sm:$0xff]
          %v1262 = vld [vmem:[#allocation18 + $0x358] sm:$0xff]
          %v1263 = vld [vmem:[#allocation18 + $0x360] sm:$0xff]
          %v1264 = vld [vmem:[#allocation18 + $0x368] sm:$0xff]
          %v1265 = vld [vmem:[#allocation18 + $0x370] sm:$0xff]
          %v1266 = vld [vmem:[#allocation18 + $0x378] sm:$0xff]
          %v1267 = vld [vmem:[#allocation18 + $0x380] sm:$0xff]
          %v1268 = vld [vmem:[#allocation18 + $0x388] sm:$0xff]
          %v1269 = vld [vmem:[#allocation18 + $0x390] sm:$0xff]
          %v1270 = vld [vmem:[#allocation18 + $0x398] sm:$0xff]
          %v1271 = vld [vmem:[#allocation18 + $0x3a0] sm:$0xff]
          %v1272 = vld [vmem:[#allocation18 + $0x3a8] sm:$0xff]
          %v1273 = vld [vmem:[#allocation18 + $0x3b0] sm:$0xff]
          %v1274 = vld [vmem:[#allocation18 + $0x3b8] sm:$0xff]
          %v1275 = vld [vmem:[#allocation18 + $0x3c0] sm:$0xff]
          %v1276 = vld [vmem:[#allocation18 + $0x3c8] sm:$0xff]
          %v1277 = vld [vmem:[#allocation18 + $0x3d0] sm:$0xff]
          %v1278 = vld [vmem:[#allocation18 + $0x3d8] sm:$0xff]
          %v1279 = vld [vmem:[#allocation18 + $0x3e0] sm:$0xff]
          %v1280 = vld [vmem:[#allocation18 + $0x3e8] sm:$0xff]
          %v1281 = vld [vmem:[#allocation18 + $0x3f0] sm:$0xff]
          %v1282 = vld [vmem:[#allocation18 + $0x3f8] sm:$0xff]
          %v1283 = vld [vmem:[#allocation18 + $0x400] sm:$0xff]
          %v1284 = vld [vmem:[#allocation18 + $0x408] sm:$0xff]
          %v1285 = vld [vmem:[#allocation18 + $0x410] sm:$0xff]
          %v1286 = vld [vmem:[#allocation18 + $0x418] sm:$0xff]
          %v1287 = vld [vmem:[#allocation18 + $0x420] sm:$0xff]
          %v1288 = vld [vmem:[#allocation18 + $0x428] sm:$0xff]
          %v1289 = vld [vmem:[#allocation18 + $0x430] sm:$0xff]
          %v1290 = vld [vmem:[#allocation18 + $0x438] sm:$0xff]
          %v1291 = vld [vmem:[#allocation18 + $0x440] sm:$0xff]
          %v1292 = vld [vmem:[#allocation18 + $0x448] sm:$0xff]
          %v1293 = vld [vmem:[#allocation18 + $0x450] sm:$0xff]
          %v1294 = vld [vmem:[#allocation18 + $0x458] sm:$0xff]
          %v1295 = vld [vmem:[#allocation18 + $0x460] sm:$0xff]
          %v1296 = vld [vmem:[#allocation18 + $0x468] sm:$0xff]
          %v1297 = vld [vmem:[#allocation18 + $0x470] sm:$0xff]
          %v1298 = vld [vmem:[#allocation18 + $0x478] sm:$0xff]
          %v1299 = vld [vmem:[%s10] sm:$0x7]
          %v1301 = vlaneseq
          %v1302 = vshrl.u32 %v1301, 7
          %v1303 = vsub.s32 0, %v1302
          %v1304 = vrot.slane %v1299, %v1303
          %v1305 = vlaneseq
          %v1306 = vshrl.u32 %v1305, 7
          %v1307 = vsub.s32 1, %v1306
          %v1308 = vrot.slane %v1299, %v1307
          %v1309 = vlaneseq
          %v1310 = vshrl.u32 %v1309, 7
          %v1311 = vsub.s32 2, %v1310
          %v1312 = vrot.slane %v1299, %v1311
          %1316 = vmatprep.subr.mxu0 %v1201
          %1317 = vmatpush1.msra.mxu0 %v1200
          %1318 = vmatprep.subr.mxu0 %v1198
          %1319 = vmatpush1.msra.mxu0 %v1197
          %1320 = vmatprep.subr.mxu0 %v1195
          %1321 = vmatpush1.msra.mxu0 %v1194
          %1322 = vmatprep.subr.mxu0 %v1192
          %1323 = vmatpush1.msra.mxu0 %v1191
          %1324 = vmatprep.subr.mxu0 %v1189
          %1325 = vmatpush1.msra.mxu0 %v1188
          %1326 = vmatprep.subr.mxu0 %v1186
          %1327 = vmatpush1.msra.mxu0 %v1185
          %1328 = vmatprep.subr.mxu0 %v1183
          %1329 = vmatpush1.msra.mxu0 %v1182
          %1330 = vmatprep.subr.mxu0 %v1180
          %1331 = vmatpush1.msra.mxu0 %v1179
          %1332 = vmatprep.subr.mxu0 %v1177
          %1333 = vmatpush1.msra.mxu0 %v1176
          %1334 = vmatprep.subr.mxu0 %v1174
          %1335 = vmatpush1.msra.mxu0 %v1173
          %1336 = vmatprep.subr.mxu0 %v1171
          %1337 = vmatpush1.msra.mxu0 %v1170
          %1338 = vmatprep.subr.mxu0 %v1168
          %1339 = vmatpush1.msra.mxu0 %v1167
          %1340 = vmatprep.subr.mxu0 %v1165
          %1341 = vmatpush1.msra.mxu0 %v1164
          %1342 = vmatprep.subr.mxu0 %v1162
          %1343 = vmatpush1.msra.mxu0 %v1161
          %1344 = vmatprep.subr.mxu0 %v1159
          %1345 = vmatpush1.msra.mxu0 %v1158
          %1346 = vmatprep.subr.mxu0 %v1156
          %1347 = vmatpush1.msra.mxu0 %v1155
          %1348 = vmatprep.subr.mxu0 %v1249
          %1349 = vmatpush2.msra.mxu0 %v1248
          %1350 = vmatprep.subr.mxu0 %v1246
          %1351 = vmatpush2.msra.mxu0 %v1245
          %1352 = vmatprep.subr.mxu0 %v1243
          %1353 = vmatpush2.msra.mxu0 %v1242
          %1354 = vmatprep.subr.mxu0 %v1240
          %1355 = vmatpush2.msra.mxu0 %v1239
          %1356 = vmatprep.subr.mxu0 %v1237
          %1357 = vmatpush2.msra.mxu0 %v1236
          %1358 = vmatprep.subr.mxu0 %v1234
          %1359 = vmatpush2.msra.mxu0 %v1233
          %1360 = vmatprep.subr.mxu0 %v1231
          %1361 = vmatpush2.msra.mxu0 %v1230
          %1362 = vmatprep.subr.mxu0 %v1228
          %1363 = vmatpush2.msra.mxu0 %v1227
          %1364 = vmatprep.subr.mxu0 %v1225
          %1365 = vmatpush2.msra.mxu0 %v1224
          %1366 = vmatprep.subr.mxu0 %v1222
          %1367 = vmatpush2.msra.mxu0 %v1221
          %1368 = vmatprep.subr.mxu0 %v1219
          %1369 = vmatpush2.msra.mxu0 %v1218
          %1370 = vmatprep.subr.mxu0 %v1216
          %1371 = vmatpush2.msra.mxu0 %v1215
          %1372 = vmatprep.subr.mxu0 %v1213
          %1373 = vmatpush2.msra.mxu0 %v1212
          %1374 = vmatprep.subr.mxu0 %v1210
          %1375 = vmatpush2.msra.mxu0 %v1209
          %1376 = vmatprep.subr.mxu0 %v1207
          %1377 = vmatpush2.msra.mxu0 %v1206
          %1378 = vmatprep.subr.mxu0 %v1204
          %1379 = vmatpush2.msra.mxu0 %v1203
          %1380 = vmatprep.mubr.f32.mxu0 %v1152
          %1381 = vmatmul.mubr.f32.gmra.mxu0 %v1150
          %v1382 = vpop.f32.mrf.mxu0
          %v1383 = vadd.f32 %v1304, %v1382
          %v1384 = vpop.f32.mrf.mxu0
          %v1385 = vadd.f32 %v1308, %v1384
          %1386 = vdwg.mxu0
          %1387 = vmatprep.subr.mxu0 %v1297
          %1388 = vmatpush1.msra.mxu0 %v1296
          %1389 = vmatprep.subr.mxu0 %v1294
          %1390 = vmatpush1.msra.mxu0 %v1293
          %1391 = vmatprep.subr.mxu0 %v1291
          %1392 = vmatpush1.msra.mxu0 %v1290
          %1393 = vmatprep.subr.mxu0 %v1288
          %1394 = vmatpush1.msra.mxu0 %v1287
          %1395 = vmatprep.subr.mxu0 %v1285
          %1396 = vmatpush1.msra.mxu0 %v1284
          %1397 = vmatprep.subr.mxu0 %v1282
          %1398 = vmatpush1.msra.mxu0 %v1281
          %1399 = vmatprep.subr.mxu0 %v1279
          %1400 = vmatpush1.msra.mxu0 %v1278
          %1401 = vmatprep.subr.mxu0 %v1276
          %1402 = vmatpush1.msra.mxu0 %v1275
          %1403 = vmatprep.subr.mxu0 %v1273
          %1404 = vmatpush1.msra.mxu0 %v1272
          %1405 = vmatprep.subr.mxu0 %v1270
          %1406 = vmatpush1.msra.mxu0 %v1269
          %1407 = vmatprep.subr.mxu0 %v1267
          %1408 = vmatpush1.msra.mxu0 %v1266
          %1409 = vmatprep.subr.mxu0 %v1264
          %1410 = vmatpush1.msra.mxu0 %v1263
          %1411 = vmatprep.subr.mxu0 %v1261
          %1412 = vmatpush1.msra.mxu0 %v1260
          %1413 = vmatprep.subr.mxu0 %v1258
          %1414 = vmatpush1.msra.mxu0 %v1257
          %1415 = vmatprep.subr.mxu0 %v1255
          %1416 = vmatpush1.msra.mxu0 %v1254
          %1417 = vmatprep.subr.mxu0 %v1252
          %1418 = vmatpush1.msra.mxu0 %v1251
          %1419 = vmatprep.subr.mxu0 0.0
          %1420 = vmatpush2.msra.mxu0 0.0
          %1421 = vmatprep.subr.mxu0 0.0
          %1422 = vmatpush2.msra.mxu0 0.0
          %1423 = vmatprep.subr.mxu0 0.0
          %1424 = vmatpush2.msra.mxu0 0.0
          %1425 = vmatprep.subr.mxu0 0.0
          %1426 = vmatpush2.msra.mxu0 0.0
          %1427 = vmatprep.subr.mxu0 0.0
          %1428 = vmatpush2.msra.mxu0 0.0
          %1429 = vmatprep.subr.mxu0 0.0
          %1430 = vmatpush2.msra.mxu0 0.0
          %1431 = vmatprep.subr.mxu0 0.0
          %1432 = vmatpush2.msra.mxu0 0.0
          %1433 = vmatprep.subr.mxu0 0.0
          %1434 = vmatpush2.msra.mxu0 0.0
          %1435 = vmatprep.subr.mxu0 0.0
          %1436 = vmatpush2.msra.mxu0 0.0
          %1437 = vmatprep.subr.mxu0 0.0
          %1438 = vmatpush2.msra.mxu0 0.0
          %1439 = vmatprep.subr.mxu0 0.0
          %1440 = vmatpush2.msra.mxu0 0.0
          %1441 = vmatprep.subr.mxu0 0.0
          %1442 = vmatpush2.msra.mxu0 0.0
          %1443 = vmatprep.subr.mxu0 0.0
          %1444 = vmatpush2.msra.mxu0 0.0
          %1445 = vmatprep.subr.mxu0 0.0
          %1446 = vmatpush2.msra.mxu0 0.0
          %1447 = vmatprep.subr.mxu0 0.0
          %1448 = vmatpush2.msra.mxu0 0.0
          %1449 = vmatprep.subr.mxu0 0.0
          %1450 = vmatpush2.msra.mxu0 0.0
          %1451 = vmatprep.mubr.f32.mxu0 0.0
          %1452 = vmatmul.mubr.f32.gmra.mxu0 %v1154
          %v1453 = vpop.f32.mrf.mxu0
          %v1454 = vadd.f32 %v1383, %v1453
          %v1455 = vpop.f32.mrf.mxu0
          %v1456 = vadd.f32 %v1385, %v1455
          %1457 = vdwg.mxu0
          %1458 = vmatprep.subr.mxu0 0.0
          %1459 = vmatpush1.msra.mxu0 %v1202
          %1460 = vmatprep.subr.mxu0 0.0
          %1461 = vmatpush1.msra.mxu0 %v1199
          %1462 = vmatprep.subr.mxu0 0.0
          %1463 = vmatpush1.msra.mxu0 %v1196
          %1464 = vmatprep.subr.mxu0 0.0
          %1465 = vmatpush1.msra.mxu0 %v1193
          %1466 = vmatprep.subr.mxu0 0.0
          %1467 = vmatpush1.msra.mxu0 %v1190
          %1468 = vmatprep.subr.mxu0 0.0
          %1469 = vmatpush1.msra.mxu0 %v1187
          %1470 = vmatprep.subr.mxu0 0.0
          %1471 = vmatpush1.msra.mxu0 %v1184
          %1472 = vmatprep.subr.mxu0 0.0
          %1473 = vmatpush1.msra.mxu0 %v1181
          %1474 = vmatprep.subr.mxu0 0.0
          %1475 = vmatpush1.msra.mxu0 %v1178
          %1476 = vmatprep.subr.mxu0 0.0
          %1477 = vmatpush1.msra.mxu0 %v1175
          %1478 = vmatprep.subr.mxu0 0.0
          %1479 = vmatpush1.msra.mxu0 %v1172
          %1480 = vmatprep.subr.mxu0 0.0
          %1481 = vmatpush1.msra.mxu0 %v1169
          %1482 = vmatprep.subr.mxu0 0.0
          %1483 = vmatpush1.msra.mxu0 %v1166
          %1484 = vmatprep.subr.mxu0 0.0
          %1485 = vmatpush1.msra.mxu0 %v1163
          %1486 = vmatprep.subr.mxu0 0.0
          %1487 = vmatpush1.msra.mxu0 %v1160
          %1488 = vmatprep.subr.mxu0 0.0
          %1489 = vmatpush1.msra.mxu0 %v1157
          %1490 = vmatprep.subr.mxu0 0.0
          %1491 = vmatpush2.msra.mxu0 %v1250
          %1492 = vmatprep.subr.mxu0 0.0
          %1493 = vmatpush2.msra.mxu0 %v1247
          %1494 = vmatprep.subr.mxu0 0.0
          %1495 = vmatpush2.msra.mxu0 %v1244
          %1496 = vmatprep.subr.mxu0 0.0
          %1497 = vmatpush2.msra.mxu0 %v1241
          %1498 = vmatprep.subr.mxu0 0.0
          %1499 = vmatpush2.msra.mxu0 %v1238
          %1500 = vmatprep.subr.mxu0 0.0
          %1501 = vmatpush2.msra.mxu0 %v1235
          %1502 = vmatprep.subr.mxu0 0.0
          %1503 = vmatpush2.msra.mxu0 %v1232
          %1504 = vmatprep.subr.mxu0 0.0
          %1505 = vmatpush2.msra.mxu0 %v1229
          %1506 = vmatprep.subr.mxu0 0.0
          %1507 = vmatpush2.msra.mxu0 %v1226
          %1508 = vmatprep.subr.mxu0 0.0
          %1509 = vmatpush2.msra.mxu0 %v1223
          %1510 = vmatprep.subr.mxu0 0.0
          %1511 = vmatpush2.msra.mxu0 %v1220
          %1512 = vmatprep.subr.mxu0 0.0
          %1513 = vmatpush2.msra.mxu0 %v1217
          %1514 = vmatprep.subr.mxu0 0.0
          %1515 = vmatpush2.msra.mxu0 %v1214
          %1516 = vmatprep.subr.mxu0 0.0
          %1517 = vmatpush2.msra.mxu0 %v1211
          %1518 = vmatprep.subr.mxu0 0.0
          %1519 = vmatpush2.msra.mxu0 %v1208
          %1520 = vmatprep.subr.mxu0 0.0
          %1521 = vmatpush2.msra.mxu0 %v1205
          %1522 = vmatprep.mubr.f32.mxu0 %v1152
          %1523 = vmatmul.mubr.f32.gmra.mxu0 %v1150
          %v1524 = vpop.f32.mrf.mxu0
          %v1525 = vadd.f32 %v1312, %v1524
          %v1526 = vpop.f32.mrf.mxu0
          %1527 = vdwg.mxu0
          %1528 = vmatprep.subr.mxu0 0.0
          %1529 = vmatpush1.msra.mxu0 %v1298
          %1530 = vmatprep.subr.mxu0 0.0
          %1531 = vmatpush1.msra.mxu0 %v1295
          %1532 = vmatprep.subr.mxu0 0.0
          %1533 = vmatpush1.msra.mxu0 %v1292
          %1534 = vmatprep.subr.mxu0 0.0
          %1535 = vmatpush1.msra.mxu0 %v1289
          %1536 = vmatprep.subr.mxu0 0.0
          %1537 = vmatpush1.msra.mxu0 %v1286
          %1538 = vmatprep.subr.mxu0 0.0
          %1539 = vmatpush1.msra.mxu0 %v1283
          %1540 = vmatprep.subr.mxu0 0.0
          %1541 = vmatpush1.msra.mxu0 %v1280
          %1542 = vmatprep.subr.mxu0 0.0
          %1543 = vmatpush1.msra.mxu0 %v1277
          %1544 = vmatprep.subr.mxu0 0.0
          %1545 = vmatpush1.msra.mxu0 %v1274
          %1546 = vmatprep.subr.mxu0 0.0
          %1547 = vmatpush1.msra.mxu0 %v1271
          %1548 = vmatprep.subr.mxu0 0.0
          %1549 = vmatpush1.msra.mxu0 %v1268
          %1550 = vmatprep.subr.mxu0 0.0
          %1551 = vmatpush1.msra.mxu0 %v1265
          %1552 = vmatprep.subr.mxu0 0.0
          %1553 = vmatpush1.msra.mxu0 %v1262
          %1554 = vmatprep.subr.mxu0 0.0
          %1555 = vmatpush1.msra.mxu0 %v1259
          %1556 = vmatprep.subr.mxu0 0.0
          %1557 = vmatpush1.msra.mxu0 %v1256
          %1558 = vmatprep.subr.mxu0 0.0
          %1559 = vmatpush1.msra.mxu0 %v1253
          %1560 = vmatprep.subr.mxu0 0.0
          %1561 = vmatpush2.msra.mxu0 0.0
          %1562 = vmatprep.subr.mxu0 0.0
          %1563 = vmatpush2.msra.mxu0 0.0
          %1564 = vmatprep.subr.mxu0 0.0
          %1565 = vmatpush2.msra.mxu0 0.0
          %1566 = vmatprep.subr.mxu0 0.0
          %1567 = vmatpush2.msra.mxu0 0.0
          %1568 = vmatprep.subr.mxu0 0.0
          %1569 = vmatpush2.msra.mxu0 0.0
          %1570 = vmatprep.subr.mxu0 0.0
          %1571 = vmatpush2.msra.mxu0 0.0
          %1572 = vmatprep.subr.mxu0 0.0
          %1573 = vmatpush2.msra.mxu0 0.0
          %1574 = vmatprep.subr.mxu0 0.0
          %1575 = vmatpush2.msra.mxu0 0.0
          %1576 = vmatprep.subr.mxu0 0.0
          %1577 = vmatpush2.msra.mxu0 0.0
          %1578 = vmatprep.subr.mxu0 0.0
          %1579 = vmatpush2.msra.mxu0 0.0
          %1580 = vmatprep.subr.mxu0 0.0
          %1581 = vmatpush2.msra.mxu0 0.0
          %1582 = vmatprep.subr.mxu0 0.0
          %1583 = vmatpush2.msra.mxu0 0.0
          %1584 = vmatprep.subr.mxu0 0.0
          %1585 = vmatpush2.msra.mxu0 0.0
          %1586 = vmatprep.subr.mxu0 0.0
          %1587 = vmatpush2.msra.mxu0 0.0
          %1588 = vmatprep.subr.mxu0 0.0
          %1589 = vmatpush2.msra.mxu0 0.0
          %1590 = vmatprep.subr.mxu0 0.0
          %1591 = vmatpush2.msra.mxu0 0.0
          %1592 = vmatprep.mubr.f32.mxu0 0.0
          %1593 = vmatmul.mubr.f32.gmra.mxu0 %v1154
          %v1594 = vpop.f32.mrf.mxu0
          %v1595 = vadd.f32 %v1525, %v1594
          %v1596 = vpop.f32.mrf.mxu0
          %1597 = vdwg.mxu0
          %v1598 = vmax.f32 %v1454, 0.0
          %v1599 = vmax.f32 %v1456, 0.0
          %v1600 = vmax.f32 %v1595, 0.0
          %v1601 = vld [vmem:[#allocation20] sm:$0xff]
          %v1602 = vld [vmem:[#allocation20 + $0x8] sm:$0xff]
          %v1603 = vld [vmem:[#allocation20 + $0x10] sm:$0xff]
          %v1604 = vld [vmem:[#allocation20 + $0x18] sm:$0xff]
          %v1605 = vld [vmem:[#allocation20 + $0x20] sm:$0xff]
          %v1606 = vld [vmem:[#allocation20 + $0x28] sm:$0xff]
          %v1607 = vld [vmem:[#allocation20 + $0x30] sm:$0xff]
          %v1608 = vld [vmem:[#allocation20 + $0x38] sm:$0xff]
          %v1609 = vld [vmem:[#allocation20 + $0x40] sm:$0xff]
          %v1610 = vld [vmem:[#allocation20 + $0x48] sm:$0xff]
          %v1611 = vld [vmem:[#allocation20 + $0x50] sm:$0xff]
          %v1612 = vld [vmem:[#allocation20 + $0x58] sm:$0xff]
          %v1613 = vld [vmem:[#allocation20 + $0x60] sm:$0xff]
          %v1614 = vld [vmem:[#allocation20 + $0x68] sm:$0xff]
          %v1615 = vld [vmem:[#allocation20 + $0x70] sm:$0xff]
          %v1616 = vld [vmem:[#allocation20 + $0x78] sm:$0xff]
          %v1617 = vld [vmem:[#allocation20 + $0x80] sm:$0xff]
          %v1618 = vld [vmem:[#allocation20 + $0x88] sm:$0xff]
          %v1619 = vld [vmem:[#allocation20 + $0x90] sm:$0xff]
          %v1620 = vld [vmem:[#allocation20 + $0x98] sm:$0xff]
          %v1621 = vld [vmem:[#allocation20 + $0xa0] sm:$0xff]
          %v1622 = vld [vmem:[#allocation20 + $0xa8] sm:$0xff]
          %v1623 = vld [vmem:[#allocation20 + $0xb0] sm:$0xff]
          %v1624 = vld [vmem:[#allocation20 + $0xb8] sm:$0xff]
          %v1625 = vld [vmem:[#allocation20 + $0xc0] sm:$0xff]
          %v1626 = vld [vmem:[#allocation20 + $0xc8] sm:$0xff]
          %v1627 = vld [vmem:[#allocation20 + $0xd0] sm:$0xff]
          %v1628 = vld [vmem:[#allocation20 + $0xd8] sm:$0xff]
          %v1629 = vld [vmem:[#allocation20 + $0xe0] sm:$0xff]
          %v1630 = vld [vmem:[#allocation20 + $0xe8] sm:$0xff]
          %v1631 = vld [vmem:[#allocation20 + $0xf0] sm:$0xff]
          %v1632 = vld [vmem:[#allocation20 + $0xf8] sm:$0xff]
          %v1633 = vld [vmem:[#allocation20 + $0x100] sm:$0xff]
          %v1634 = vld [vmem:[#allocation20 + $0x108] sm:$0xff]
          %v1635 = vld [vmem:[#allocation20 + $0x110] sm:$0xff]
          %v1636 = vld [vmem:[#allocation20 + $0x118] sm:$0xff]
          %v1637 = vld [vmem:[#allocation20 + $0x120] sm:$0xff]
          %v1638 = vld [vmem:[#allocation20 + $0x128] sm:$0xff]
          %v1639 = vld [vmem:[#allocation20 + $0x130] sm:$0xff]
          %v1640 = vld [vmem:[#allocation20 + $0x138] sm:$0xff]
          %v1641 = vld [vmem:[#allocation20 + $0x140] sm:$0xff]
          %v1642 = vld [vmem:[#allocation20 + $0x148] sm:$0xff]
          %v1643 = vld [vmem:[#allocation20 + $0x150] sm:$0xff]
          %v1644 = vld [vmem:[#allocation20 + $0x158] sm:$0xff]
          %v1645 = vld [vmem:[#allocation20 + $0x160] sm:$0xff]
          %v1646 = vld [vmem:[#allocation20 + $0x168] sm:$0xff]
          %v1647 = vld [vmem:[#allocation20 + $0x170] sm:$0xff]
          %v1648 = vld [vmem:[#allocation20 + $0x178] sm:$0xff]
          %v1649 = vld [vmem:[#allocation20 + $0x180] sm:$0xff]
          %v1650 = vld [vmem:[#allocation20 + $0x188] sm:$0xff]
          %v1651 = vld [vmem:[#allocation20 + $0x190] sm:$0xff]
          %v1652 = vld [vmem:[#allocation20 + $0x198] sm:$0xff]
          %v1653 = vld [vmem:[#allocation20 + $0x1a0] sm:$0xff]
          %v1654 = vld [vmem:[#allocation20 + $0x1a8] sm:$0xff]
          %v1655 = vld [vmem:[#allocation20 + $0x1b0] sm:$0xff]
          %v1656 = vld [vmem:[#allocation20 + $0x1b8] sm:$0xff]
          %v1657 = vld [vmem:[#allocation20 + $0x1c0] sm:$0xff]
          %v1658 = vld [vmem:[#allocation20 + $0x1c8] sm:$0xff]
          %v1659 = vld [vmem:[#allocation20 + $0x1d0] sm:$0xff]
          %v1660 = vld [vmem:[#allocation20 + $0x1d8] sm:$0xff]
          %v1661 = vld [vmem:[#allocation20 + $0x1e0] sm:$0xff]
          %v1662 = vld [vmem:[#allocation20 + $0x1e8] sm:$0xff]
          %v1663 = vld [vmem:[#allocation20 + $0x1f0] sm:$0xff]
          %v1664 = vld [vmem:[#allocation20 + $0x1f8] sm:$0xff]
          %v1665 = vld [vmem:[#allocation20 + $0x200] sm:$0xff]
          %v1666 = vld [vmem:[#allocation20 + $0x208] sm:$0xff]
          %v1667 = vld [vmem:[#allocation20 + $0x210] sm:$0xff]
          %v1668 = vld [vmem:[#allocation20 + $0x218] sm:$0xff]
          %v1669 = vld [vmem:[#allocation20 + $0x220] sm:$0xff]
          %v1670 = vld [vmem:[#allocation20 + $0x228] sm:$0xff]
          %v1671 = vld [vmem:[#allocation20 + $0x230] sm:$0xff]
          %v1672 = vld [vmem:[#allocation20 + $0x238] sm:$0xff]
          %v1673 = vld [vmem:[#allocation20 + $0x240] sm:$0xff]
          %v1674 = vld [vmem:[#allocation20 + $0x248] sm:$0xff]
          %v1675 = vld [vmem:[#allocation20 + $0x250] sm:$0xff]
          %v1676 = vld [vmem:[#allocation20 + $0x258] sm:$0xff]
          %v1677 = vld [vmem:[#allocation20 + $0x260] sm:$0xff]
          %v1678 = vld [vmem:[#allocation20 + $0x268] sm:$0xff]
          %v1679 = vld [vmem:[#allocation20 + $0x270] sm:$0xff]
          %v1680 = vld [vmem:[#allocation20 + $0x278] sm:$0xff]
          %v1681 = vld [vmem:[#allocation20 + $0x280] sm:$0xff]
          %v1682 = vld [vmem:[#allocation20 + $0x288] sm:$0xff]
          %v1683 = vld [vmem:[#allocation20 + $0x290] sm:$0xff]
          %v1684 = vld [vmem:[#allocation20 + $0x298] sm:$0xff]
          %v1685 = vld [vmem:[#allocation20 + $0x2a0] sm:$0xff]
          %v1686 = vld [vmem:[#allocation20 + $0x2a8] sm:$0xff]
          %v1687 = vld [vmem:[#allocation20 + $0x2b0] sm:$0xff]
          %v1688 = vld [vmem:[#allocation20 + $0x2b8] sm:$0xff]
          %v1689 = vld [vmem:[#allocation20 + $0x2c0] sm:$0xff]
          %v1690 = vld [vmem:[#allocation20 + $0x2c8] sm:$0xff]
          %v1691 = vld [vmem:[#allocation20 + $0x2d0] sm:$0xff]
          %v1692 = vld [vmem:[#allocation20 + $0x2d8] sm:$0xff]
          %v1693 = vld [vmem:[#allocation20 + $0x2e0] sm:$0xff]
          %v1694 = vld [vmem:[#allocation20 + $0x2e8] sm:$0xff]
          %v1695 = vld [vmem:[#allocation20 + $0x2f0] sm:$0xff]
          %v1696 = vld [vmem:[#allocation20 + $0x2f8] sm:$0xff]
          %v1697 = vld [vmem:[#allocation20 + $0x300] sm:$0xff]
          %v1698 = vld [vmem:[#allocation20 + $0x308] sm:$0xff]
          %v1699 = vld [vmem:[#allocation20 + $0x310] sm:$0xff]
          %v1700 = vld [vmem:[#allocation20 + $0x318] sm:$0xff]
          %v1701 = vld [vmem:[#allocation20 + $0x320] sm:$0xff]
          %v1702 = vld [vmem:[#allocation20 + $0x328] sm:$0xff]
          %v1703 = vld [vmem:[#allocation20 + $0x330] sm:$0xff]
          %v1704 = vld [vmem:[#allocation20 + $0x338] sm:$0xff]
          %v1705 = vld [vmem:[#allocation20 + $0x340] sm:$0xff]
          %v1706 = vld [vmem:[#allocation20 + $0x348] sm:$0xff]
          %v1707 = vld [vmem:[#allocation20 + $0x350] sm:$0xff]
          %v1708 = vld [vmem:[#allocation20 + $0x358] sm:$0xff]
          %v1709 = vld [vmem:[#allocation20 + $0x360] sm:$0xff]
          %v1710 = vld [vmem:[#allocation20 + $0x368] sm:$0xff]
          %v1711 = vld [vmem:[#allocation20 + $0x370] sm:$0xff]
          %v1712 = vld [vmem:[#allocation20 + $0x378] sm:$0xff]
          %v1713 = vld [vmem:[#allocation20 + $0x380] sm:$0xff]
          %v1714 = vld [vmem:[#allocation20 + $0x388] sm:$0xff]
          %v1715 = vld [vmem:[#allocation20 + $0x390] sm:$0xff]
          %v1716 = vld [vmem:[#allocation20 + $0x398] sm:$0xff]
          %v1717 = vld [vmem:[#allocation20 + $0x3a0] sm:$0xff]
          %v1718 = vld [vmem:[#allocation20 + $0x3a8] sm:$0xff]
          %v1719 = vld [vmem:[#allocation20 + $0x3b0] sm:$0xff]
          %v1720 = vld [vmem:[#allocation20 + $0x3b8] sm:$0xff]
          %v1721 = vld [vmem:[#allocation20 + $0x3c0] sm:$0xff]
          %v1722 = vld [vmem:[#allocation20 + $0x3c8] sm:$0xff]
          %v1723 = vld [vmem:[#allocation20 + $0x3d0] sm:$0xff]
          %v1724 = vld [vmem:[#allocation20 + $0x3d8] sm:$0xff]
          %v1725 = vld [vmem:[#allocation20 + $0x3e0] sm:$0xff]
          %v1726 = vld [vmem:[#allocation20 + $0x3e8] sm:$0xff]
          %v1727 = vld [vmem:[#allocation20 + $0x3f0] sm:$0xff]
          %v1728 = vld [vmem:[#allocation20 + $0x3f8] sm:$0xff]
          %v1729 = vld [vmem:[#allocation20 + $0x400] sm:$0xff]
          %v1730 = vld [vmem:[#allocation20 + $0x408] sm:$0xff]
          %v1731 = vld [vmem:[#allocation20 + $0x410] sm:$0xff]
          %v1732 = vld [vmem:[#allocation20 + $0x418] sm:$0xff]
          %v1733 = vld [vmem:[#allocation20 + $0x420] sm:$0xff]
          %v1734 = vld [vmem:[#allocation20 + $0x428] sm:$0xff]
          %v1735 = vld [vmem:[#allocation20 + $0x430] sm:$0xff]
          %v1736 = vld [vmem:[#allocation20 + $0x438] sm:$0xff]
          %v1737 = vld [vmem:[#allocation20 + $0x440] sm:$0xff]
          %v1738 = vld [vmem:[#allocation20 + $0x448] sm:$0xff]
          %v1739 = vld [vmem:[#allocation20 + $0x450] sm:$0xff]
          %v1740 = vld [vmem:[#allocation20 + $0x458] sm:$0xff]
          %v1741 = vld [vmem:[#allocation20 + $0x460] sm:$0xff]
          %v1742 = vld [vmem:[#allocation20 + $0x468] sm:$0xff]
          %v1743 = vld [vmem:[#allocation20 + $0x470] sm:$0xff]
          %v1744 = vld [vmem:[#allocation20 + $0x478] sm:$0xff]
          %v1745 = vld [vmem:[%s12] sm:$0x7]
          %v1747 = vlaneseq
          %v1748 = vshrl.u32 %v1747, 7
          %v1749 = vsub.s32 0, %v1748
          %v1750 = vrot.slane %v1745, %v1749
          %v1751 = vlaneseq
          %v1752 = vshrl.u32 %v1751, 7
          %v1753 = vsub.s32 1, %v1752
          %v1754 = vrot.slane %v1745, %v1753
          %v1755 = vlaneseq
          %v1756 = vshrl.u32 %v1755, 7
          %v1757 = vsub.s32 2, %v1756
          %v1758 = vrot.slane %v1745, %v1757
          %1762 = vmatprep.subr.mxu0 %v1647
          %1763 = vmatpush1.msra.mxu0 %v1646
          %1764 = vmatprep.subr.mxu0 %v1644
          %1765 = vmatpush1.msra.mxu0 %v1643
          %1766 = vmatprep.subr.mxu0 %v1641
          %1767 = vmatpush1.msra.mxu0 %v1640
          %1768 = vmatprep.subr.mxu0 %v1638
          %1769 = vmatpush1.msra.mxu0 %v1637
          %1770 = vmatprep.subr.mxu0 %v1635
          %1771 = vmatpush1.msra.mxu0 %v1634
          %1772 = vmatprep.subr.mxu0 %v1632
          %1773 = vmatpush1.msra.mxu0 %v1631
          %1774 = vmatprep.subr.mxu0 %v1629
          %1775 = vmatpush1.msra.mxu0 %v1628
          %1776 = vmatprep.subr.mxu0 %v1626
          %1777 = vmatpush1.msra.mxu0 %v1625
          %1778 = vmatprep.subr.mxu0 %v1623
          %1779 = vmatpush1.msra.mxu0 %v1622
          %1780 = vmatprep.subr.mxu0 %v1620
          %1781 = vmatpush1.msra.mxu0 %v1619
          %1782 = vmatprep.subr.mxu0 %v1617
          %1783 = vmatpush1.msra.mxu0 %v1616
          %1784 = vmatprep.subr.mxu0 %v1614
          %1785 = vmatpush1.msra.mxu0 %v1613
          %1786 = vmatprep.subr.mxu0 %v1611
          %1787 = vmatpush1.msra.mxu0 %v1610
          %1788 = vmatprep.subr.mxu0 %v1608
          %1789 = vmatpush1.msra.mxu0 %v1607
          %1790 = vmatprep.subr.mxu0 %v1605
          %1791 = vmatpush1.msra.mxu0 %v1604
          %1792 = vmatprep.subr.mxu0 %v1602
          %1793 = vmatpush1.msra.mxu0 %v1601
          %1794 = vmatprep.subr.mxu0 %v1695
          %1795 = vmatpush2.msra.mxu0 %v1694
          %1796 = vmatprep.subr.mxu0 %v1692
          %1797 = vmatpush2.msra.mxu0 %v1691
          %1798 = vmatprep.subr.mxu0 %v1689
          %1799 = vmatpush2.msra.mxu0 %v1688
          %1800 = vmatprep.subr.mxu0 %v1686
          %1801 = vmatpush2.msra.mxu0 %v1685
          %1802 = vmatprep.subr.mxu0 %v1683
          %1803 = vmatpush2.msra.mxu0 %v1682
          %1804 = vmatprep.subr.mxu0 %v1680
          %1805 = vmatpush2.msra.mxu0 %v1679
          %1806 = vmatprep.subr.mxu0 %v1677
          %1807 = vmatpush2.msra.mxu0 %v1676
          %1808 = vmatprep.subr.mxu0 %v1674
          %1809 = vmatpush2.msra.mxu0 %v1673
          %1810 = vmatprep.subr.mxu0 %v1671
          %1811 = vmatpush2.msra.mxu0 %v1670
          %1812 = vmatprep.subr.mxu0 %v1668
          %1813 = vmatpush2.msra.mxu0 %v1667
          %1814 = vmatprep.subr.mxu0 %v1665
          %1815 = vmatpush2.msra.mxu0 %v1664
          %1816 = vmatprep.subr.mxu0 %v1662
          %1817 = vmatpush2.msra.mxu0 %v1661
          %1818 = vmatprep.subr.mxu0 %v1659
          %1819 = vmatpush2.msra.mxu0 %v1658
          %1820 = vmatprep.subr.mxu0 %v1656
          %1821 = vmatpush2.msra.mxu0 %v1655
          %1822 = vmatprep.subr.mxu0 %v1653
          %1823 = vmatpush2.msra.mxu0 %v1652
          %1824 = vmatprep.subr.mxu0 %v1650
          %1825 = vmatpush2.msra.mxu0 %v1649
          %1826 = vmatprep.mubr.f32.mxu0 %v1599
          %1827 = vmatmul.mubr.f32.gmra.mxu0 %v1598
          %v1828 = vpop.f32.mrf.mxu0
          %v1829 = vadd.f32 %v1750, %v1828
          %v1830 = vpop.f32.mrf.mxu0
          %v1831 = vadd.f32 %v1754, %v1830
          %1832 = vdwg.mxu0
          %1833 = vmatprep.subr.mxu0 %v1743
          %1834 = vmatpush1.msra.mxu0 %v1742
          %1835 = vmatprep.subr.mxu0 %v1740
          %1836 = vmatpush1.msra.mxu0 %v1739
          %1837 = vmatprep.subr.mxu0 %v1737
          %1838 = vmatpush1.msra.mxu0 %v1736
          %1839 = vmatprep.subr.mxu0 %v1734
          %1840 = vmatpush1.msra.mxu0 %v1733
          %1841 = vmatprep.subr.mxu0 %v1731
          %1842 = vmatpush1.msra.mxu0 %v1730
          %1843 = vmatprep.subr.mxu0 %v1728
          %1844 = vmatpush1.msra.mxu0 %v1727
          %1845 = vmatprep.subr.mxu0 %v1725
          %1846 = vmatpush1.msra.mxu0 %v1724
          %1847 = vmatprep.subr.mxu0 %v1722
          %1848 = vmatpush1.msra.mxu0 %v1721
          %1849 = vmatprep.subr.mxu0 %v1719
          %1850 = vmatpush1.msra.mxu0 %v1718
          %1851 = vmatprep.subr.mxu0 %v1716
          %1852 = vmatpush1.msra.mxu0 %v1715
          %1853 = vmatprep.subr.mxu0 %v1713
          %1854 = vmatpush1.msra.mxu0 %v1712
          %1855 = vmatprep.subr.mxu0 %v1710
          %1856 = vmatpush1.msra.mxu0 %v1709
          %1857 = vmatprep.subr.mxu0 %v1707
          %1858 = vmatpush1.msra.mxu0 %v1706
          %1859 = vmatprep.subr.mxu0 %v1704
          %1860 = vmatpush1.msra.mxu0 %v1703
          %1861 = vmatprep.subr.mxu0 %v1701
          %1862 = vmatpush1.msra.mxu0 %v1700
          %1863 = vmatprep.subr.mxu0 %v1698
          %1864 = vmatpush1.msra.mxu0 %v1697
          %1865 = vmatprep.subr.mxu0 0.0
          %1866 = vmatpush2.msra.mxu0 0.0
          %1867 = vmatprep.subr.mxu0 0.0
          %1868 = vmatpush2.msra.mxu0 0.0
          %1869 = vmatprep.subr.mxu0 0.0
          %1870 = vmatpush2.msra.mxu0 0.0
          %1871 = vmatprep.subr.mxu0 0.0
          %1872 = vmatpush2.msra.mxu0 0.0
          %1873 = vmatprep.subr.mxu0 0.0
          %1874 = vmatpush2.msra.mxu0 0.0
          %1875 = vmatprep.subr.mxu0 0.0
          %1876 = vmatpush2.msra.mxu0 0.0
          %1877 = vmatprep.subr.mxu0 0.0
          %1878 = vmatpush2.msra.mxu0 0.0
          %1879 = vmatprep.subr.mxu0 0.0
          %1880 = vmatpush2.msra.mxu0 0.0
          %1881 = vmatprep.subr.mxu0 0.0
          %1882 = vmatpush2.msra.mxu0 0.0
          %1883 = vmatprep.subr.mxu0 0.0
          %1884 = vmatpush2.msra.mxu0 0.0
          %1885 = vmatprep.subr.mxu0 0.0
          %1886 = vmatpush2.msra.mxu0 0.0
          %1887 = vmatprep.subr.mxu0 0.0
          %1888 = vmatpush2.msra.mxu0 0.0
          %1889 = vmatprep.subr.mxu0 0.0
          %1890 = vmatpush2.msra.mxu0 0.0
          %1891 = vmatprep.subr.mxu0 0.0
          %1892 = vmatpush2.msra.mxu0 0.0
          %1893 = vmatprep.subr.mxu0 0.0
          %1894 = vmatpush2.msra.mxu0 0.0
          %1895 = vmatprep.subr.mxu0 0.0
          %1896 = vmatpush2.msra.mxu0 0.0
          %1897 = vmatprep.mubr.f32.mxu0 0.0
          %1898 = vmatmul.mubr.f32.gmra.mxu0 %v1600
          %v1899 = vpop.f32.mrf.mxu0
          %v1900 = vadd.f32 %v1829, %v1899
          %v1901 = vpop.f32.mrf.mxu0
          %v1902 = vadd.f32 %v1831, %v1901
          %1903 = vdwg.mxu0
          %1904 = vmatprep.subr.mxu0 0.0
          %1905 = vmatpush1.msra.mxu0 %v1648
          %1906 = vmatprep.subr.mxu0 0.0
          %1907 = vmatpush1.msra.mxu0 %v1645
          %1908 = vmatprep.subr.mxu0 0.0
          %1909 = vmatpush1.msra.mxu0 %v1642
          %1910 = vmatprep.subr.mxu0 0.0
          %1911 = vmatpush1.msra.mxu0 %v1639
          %1912 = vmatprep.subr.mxu0 0.0
          %1913 = vmatpush1.msra.mxu0 %v1636
          %1914 = vmatprep.subr.mxu0 0.0
          %1915 = vmatpush1.msra.mxu0 %v1633
          %1916 = vmatprep.subr.mxu0 0.0
          %1917 = vmatpush1.msra.mxu0 %v1630
          %1918 = vmatprep.subr.mxu0 0.0
          %1919 = vmatpush1.msra.mxu0 %v1627
          %1920 = vmatprep.subr.mxu0 0.0
          %1921 = vmatpush1.msra.mxu0 %v1624
          %1922 = vmatprep.subr.mxu0 0.0
          %1923 = vmatpush1.msra.mxu0 %v1621
          %1924 = vmatprep.subr.mxu0 0.0
          %1925 = vmatpush1.msra.mxu0 %v1618
          %1926 = vmatprep.subr.mxu0 0.0
          %1927 = vmatpush1.msra.mxu0 %v1615
          %1928 = vmatprep.subr.mxu0 0.0
          %1929 = vmatpush1.msra.mxu0 %v1612
          %1930 = vmatprep.subr.mxu0 0.0
          %1931 = vmatpush1.msra.mxu0 %v1609
          %1932 = vmatprep.subr.mxu0 0.0
          %1933 = vmatpush1.msra.mxu0 %v1606
          %1934 = vmatprep.subr.mxu0 0.0
          %1935 = vmatpush1.msra.mxu0 %v1603
          %1936 = vmatprep.subr.mxu0 0.0
          %1937 = vmatpush2.msra.mxu0 %v1696
          %1938 = vmatprep.subr.mxu0 0.0
          %1939 = vmatpush2.msra.mxu0 %v1693
          %1940 = vmatprep.subr.mxu0 0.0
          %1941 = vmatpush2.msra.mxu0 %v1690
          %1942 = vmatprep.subr.mxu0 0.0
          %1943 = vmatpush2.msra.mxu0 %v1687
          %1944 = vmatprep.subr.mxu0 0.0
          %1945 = vmatpush2.msra.mxu0 %v1684
          %1946 = vmatprep.subr.mxu0 0.0
          %1947 = vmatpush2.msra.mxu0 %v1681
          %1948 = vmatprep.subr.mxu0 0.0
          %1949 = vmatpush2.msra.mxu0 %v1678
          %1950 = vmatprep.subr.mxu0 0.0
          %1951 = vmatpush2.msra.mxu0 %v1675
          %1952 = vmatprep.subr.mxu0 0.0
          %1953 = vmatpush2.msra.mxu0 %v1672
          %1954 = vmatprep.subr.mxu0 0.0
          %1955 = vmatpush2.msra.mxu0 %v1669
          %1956 = vmatprep.subr.mxu0 0.0
          %1957 = vmatpush2.msra.mxu0 %v1666
          %1958 = vmatprep.subr.mxu0 0.0
          %1959 = vmatpush2.msra.mxu0 %v1663
          %1960 = vmatprep.subr.mxu0 0.0
          %1961 = vmatpush2.msra.mxu0 %v1660
          %1962 = vmatprep.subr.mxu0 0.0
          %1963 = vmatpush2.msra.mxu0 %v1657
          %1964 = vmatprep.subr.mxu0 0.0
          %1965 = vmatpush2.msra.mxu0 %v1654
          %1966 = vmatprep.subr.mxu0 0.0
          %1967 = vmatpush2.msra.mxu0 %v1651
          %1968 = vmatprep.mubr.f32.mxu0 %v1599
          %1969 = vmatmul.mubr.f32.gmra.mxu0 %v1598
          %v1970 = vpop.f32.mrf.mxu0
          %v1971 = vadd.f32 %v1758, %v1970
          %v1972 = vpop.f32.mrf.mxu0
          %1973 = vdwg.mxu0
          %1974 = vmatprep.subr.mxu0 0.0
          %1975 = vmatpush1.msra.mxu0 %v1744
          %1976 = vmatprep.subr.mxu0 0.0
          %1977 = vmatpush1.msra.mxu0 %v1741
          %1978 = vmatprep.subr.mxu0 0.0
          %1979 = vmatpush1.msra.mxu0 %v1738
          %1980 = vmatprep.subr.mxu0 0.0
          %1981 = vmatpush1.msra.mxu0 %v1735
          %1982 = vmatprep.subr.mxu0 0.0
          %1983 = vmatpush1.msra.mxu0 %v1732
          %1984 = vmatprep.subr.mxu0 0.0
          %1985 = vmatpush1.msra.mxu0 %v1729
          %1986 = vmatprep.subr.mxu0 0.0
          %1987 = vmatpush1.msra.mxu0 %v1726
          %1988 = vmatprep.subr.mxu0 0.0
          %1989 = vmatpush1.msra.mxu0 %v1723
          %1990 = vmatprep.subr.mxu0 0.0
          %1991 = vmatpush1.msra.mxu0 %v1720
          %1992 = vmatprep.subr.mxu0 0.0
          %1993 = vmatpush1.msra.mxu0 %v1717
          %1994 = vmatprep.subr.mxu0 0.0
          %1995 = vmatpush1.msra.mxu0 %v1714
          %1996 = vmatprep.subr.mxu0 0.0
          %1997 = vmatpush1.msra.mxu0 %v1711
          %1998 = vmatprep.subr.mxu0 0.0
          %1999 = vmatpush1.msra.mxu0 %v1708
          %2000 = vmatprep.subr.mxu0 0.0
          %2001 = vmatpush1.msra.mxu0 %v1705
          %2002 = vmatprep.subr.mxu0 0.0
          %2003 = vmatpush1.msra.mxu0 %v1702
          %2004 = vmatprep.subr.mxu0 0.0
          %2005 = vmatpush1.msra.mxu0 %v1699
          %2006 = vmatprep.subr.mxu0 0.0
          %2007 = vmatpush2.msra.mxu0 0.0
          %2008 = vmatprep.subr.mxu0 0.0
          %2009 = vmatpush2.msra.mxu0 0.0
          %2010 = vmatprep.subr.mxu0 0.0
          %2011 = vmatpush2.msra.mxu0 0.0
          %2012 = vmatprep.subr.mxu0 0.0
          %2013 = vmatpush2.msra.mxu0 0.0
          %2014 = vmatprep.subr.mxu0 0.0
          %2015 = vmatpush2.msra.mxu0 0.0
          %2016 = vmatprep.subr.mxu0 0.0
          %2017 = vmatpush2.msra.mxu0 0.0
          %2018 = vmatprep.subr.mxu0 0.0
          %2019 = vmatpush2.msra.mxu0 0.0
          %2020 = vmatprep.subr.mxu0 0.0
          %2021 = vmatpush2.msra.mxu0 0.0
          %2022 = vmatprep.subr.mxu0 0.0
          %2023 = vmatpush2.msra.mxu0 0.0
          %2024 = vmatprep.subr.mxu0 0.0
          %2025 = vmatpush2.msra.mxu0 0.0
          %2026 = vmatprep.subr.mxu0 0.0
          %2027 = vmatpush2.msra.mxu0 0.0
          %2028 = vmatprep.subr.mxu0 0.0
          %2029 = vmatpush2.msra.mxu0 0.0
          %2030 = vmatprep.subr.mxu0 0.0
          %2031 = vmatpush2.msra.mxu0 0.0
          %2032 = vmatprep.subr.mxu0 0.0
          %2033 = vmatpush2.msra.mxu0 0.0
          %2034 = vmatprep.subr.mxu0 0.0
          %2035 = vmatpush2.msra.mxu0 0.0
          %2036 = vmatprep.subr.mxu0 0.0
          %2037 = vmatpush2.msra.mxu0 0.0
          %2038 = vmatprep.mubr.f32.mxu0 0.0
          %2039 = vmatmul.mubr.f32.gmra.mxu0 %v1600
          %v2040 = vpop.f32.mrf.mxu0
          %v2041 = vadd.f32 %v1971, %v2040
          %v2042 = vpop.f32.mrf.mxu0
          %2043 = vdwg.mxu0
          %v2044 = vmul.f32 %v1900, %v1900
          %v2045 = vmul.f32 %v1902, %v1902
          %v2046 = vmul.f32 %v2041, %v2041
          %v2047 = vadd.f32 %v2044, %v2045
          %v2048 = vadd.f32 %v2047, %v2046
          %2049 = vadd.xlane.f32.xlu0 %v2048
          %v2050 = vpop.xlane.xlu0 %2049
          %v2051 = vmax.f32 %v2050, 1e-24
          %v2052 = vrsqrt.pop %v2051
          %v2053 = vmul.f32 %v1900, %v2052
          %v2054 = vmul.f32 %v1902, %v2052
          %v2055 = vmul.f32 %v2041, %v2052
          %2056 = vst [vmem:[#allocation21] sm:$0xff] %v2053
          %2057 = vst [vmem:[#allocation21 + $0x8] sm:$0xff] %v2054
          %2058 = vst [vmem:[#allocation21 + $0x10] sm:$0xff] %v2055
          %v2059 = vmul.f32 %v1150, %v1150
          %v2060 = vmul.f32 %v1152, %v1152
          %v2061 = vmul.f32 %v1154, %v1154
          %v2062 = vadd.f32 %v2059, %v2060
          %v2063 = vadd.f32 %v2062, %v2061
          %2064 = vadd.xlane.f32.xlu0 %v2063
          %v2065 = vpop.xlane.xlu0 %2064
          %v2066 = vmax.f32 %v2065, 1e-24
          %v2067 = vrsqrt.pop %v2066
          %v2068 = vmul.f32 %v1150, %v2067
          %v2069 = vmul.f32 %v1152, %v2067
          %v2070 = vmul.f32 %v1154, %v2067
          %2071 = vst [vmem:[#allocation22] sm:$0xff] %v2068
          %2072 = vst [vmem:[#allocation22 + $0x8] sm:$0xff] %v2069
          %2073 = vst [vmem:[#allocation22 + $0x10] sm:$0xff] %v2070
        $region124: #{tpu_custom_call.1} parent=71 // pred_fallthru
          _
        // Predicated region
        $region125: #{tpu_custom_call.1} parent=71 // pred_check
          %p2074 = pneg %p376
        $region126: #{tpu_custom_call.1} parent=71 // pred_check_branch
          %2076 = sbr.rel (%p2074) target = $region128
        $region127: #{tpu_custom_call.1} parent=71 // pred_region
          %s2078 = ssub.s32 384, 384
          %2079 = vsyncadd [#allocation11], %s2078
          %s2081 = sshll.u32 [#allocation21], 4
          %s2082 = int_to_ptr.vmem [resolvable:$true] %s2081
          %2084 = dma.vmem_to_hbm [thread:$0]  %s2082, 384, %s13, [#allocation11]
        $region128: #{tpu_custom_call.1} parent=71 // pred_fallthru
          _
        // Predicated region
        $region129: #{tpu_custom_call.1} parent=71 // pred_check
          %p2085 = pneg %p397
        $region130: #{tpu_custom_call.1} parent=71 // pred_check_branch
          %2087 = sbr.rel (%p2085) target = $region132
        $region131: #{tpu_custom_call.1} parent=71 // pred_region
          %s2089 = ssub.s32 384, 384
          %2090 = vsyncadd [#allocation23], %s2089
          %s2092 = sshll.u32 [#allocation22], 4
          %s2093 = int_to_ptr.vmem [resolvable:$true] %s2092
          %2095 = dma.vmem_to_hbm [thread:$0]  %s2093, 384, %s14, [#allocation23]
        $region132: #{tpu_custom_call.1} parent=71 // pred_fallthru
          _
        // Predicated region
        $region133: #{tpu_custom_call.1} parent=71 // pred_check
          %p2096 = pneg %p376
        $region134: #{tpu_custom_call.1} parent=71 // pred_check_branch
          %2098 = sbr.rel (%p2096) target = $region136
        $region135: #{tpu_custom_call.1} parent=71 // pred_region
          %2099 = dma.done [#allocation11], 384
        $region136: #{tpu_custom_call.1} parent=71 // pred_fallthru
          _
        // Predicated region
        $region137: #{tpu_custom_call.1} parent=71 // pred_check
          %p2100 = pneg %p397
        $region138: #{tpu_custom_call.1} parent=71 // pred_check_branch
          %2102 = sbr.rel (%p2100) target = $region140
        $region139: #{tpu_custom_call.1} parent=71 // pred_region
          %2103 = dma.done [#allocation23], 384
        $region140: #{tpu_custom_call.1} parent=71 // pred_fallthru
          _
      $region72: #{tpu_custom_call.1} parent=5 // pred_fallthru
        _
      %p2104 = scmp.le.s32.totalorder 2, %s29
      // Predicated region
      $region141: #{tpu_custom_call.1} parent=5 // pred_check
        %p2105 = pneg %p2104
      $region142: #{tpu_custom_call.1} parent=5 // pred_check_branch
        %2107 = sbr.rel (%p2105) target = $region144
      $region143: #{tpu_custom_call.1} parent=5 // pred_region
        %s2108 = ssub.s32 %s29, 2
      $region144: #{tpu_custom_call.1} parent=5 // pred_fallthru
        _
    $region6: #{tpu_custom_call.1} parent=1 // loop_footer
      %s33 = sadd.s32 1, %s29
    $region7: #{tpu_custom_call.1} parent=1 // loop_footer_branch
      %28 = sbr.rel target = $region3
    $region8: #{tpu_custom_call.1} parent=1 // loop_exit
      _
    %2109 = vsyncpa [#allocation10], 1
    %s2110 = scalar_lea.sflag [#allocation10], 1
    %2111 = vsyncpa %s2110, 1
    %2112 = vsyncpa [#allocation13], 1
    %2113 = vsyncpa [#allocation16], 1
    %s2114 = scalar_lea.sflag [#allocation16], 1
    %2115 = vsyncpa %s2114, 1
    %2116 = vsyncpa [#allocation19], 1
    %2117 = vsyncpa [#allocation11], 1
    %s2118 = scalar_lea.sflag [#allocation11], 1
    %2119 = vsyncpa %s2118, 1
    %2120 = vsyncpa [#allocation23], 1

</llo_original>
